<compile_context>
chip_gen: v5e
topology: v5e:2x2
jax: 0.10.0
libtpu: 0.0.40
codegen_flags: <defaults>
</compile_context>

<pallas_src>
import functools

import jax
import jax.numpy as jnp
from jax.experimental import pallas as pl
from jax.experimental.pallas import tpu as pltpu


def _round_up(x, m):
    return (x + m - 1) // m * m


def _default_tile_m():
    """Per-generation row-tile size for the M grid (multiple of 8)."""
    try:
        kind = jax.devices()[0].device_kind.lower()
    except Exception:
        kind = ""
    # v7x: 64 MiB VMEM / TensorCore -> smaller tile; v5e/v6e: 128 MiB -> bigger.
    if "v7" in kind or "7x" in kind:
        return 1024
    return 2048


# ---------------------------------------------------------------------------
# Pallas kernel 1: M-tiled matmul + bias + optional ReLU (conv hot path).
#   x: (TM, K) bf16, w: (K, N) bf16 resident, b: (1, N) f32 resident.
# ---------------------------------------------------------------------------
def _matmul_bias_act_kernel(x_ref, w_ref, b_ref, o_ref, *, relu):
    acc = jnp.dot(x_ref[...], w_ref[...], preferred_element_type=jnp.float32)
    acc = acc + b_ref[...]                      # (1, N) broadcasts over (TM, N)
    if relu:
        acc = jnp.maximum(acc, 0.0)
    o_ref[...] = acc.astype(o_ref.dtype)


def matmul_bias_act(x, w, b, *, relu, out_dtype, tile_m=None):
    """x: (M, K), w: (K, N), b: (N,) or (1, N) -> (M, N) in out_dtype.

    M is tiled over a 1-D "parallel" grid; w and b are VMEM-resident across
    the grid.  x/w are fed to the MXU as bf16 with f32 accumulation.
    """
    M, K = x.shape
    K2, N = w.shape
    assert K == K2
    if tile_m is None:
        tile_m = _default_tile_m()

    if M <= tile_m:
        tm, grid = M, (1,)                      # exact single block (full dims)
    else:
        tm, grid = tile_m, (pl.cdiv(M, tile_m),)  # tile_m is a multiple of 8

    x = x.astype(jnp.bfloat16)
    w = w.astype(jnp.bfloat16)
    b = b.reshape(1, N).astype(jnp.float32)

    out_itemsize = jnp.dtype(out_dtype).itemsize
    cost = pl.CostEstimate(
        flops=2 * M * K * N,
        transcendentals=0,
        bytes_accessed=(M * K + K * N) * 2 + N * 4 + M * N * out_itemsize,
    )

    return pl.pallas_call(
        functools.partial(_matmul_bias_act_kernel, relu=relu),
        out_shape=jax.ShapeDtypeStruct((M, N), out_dtype),
        grid=grid,
        in_specs=[
            pl.BlockSpec((tm, K), lambda i: (i, 0)),   # row tiles, pipelined
            pl.BlockSpec((K, N), lambda i: (0, 0)),    # weights stay resident
            pl.BlockSpec((1, N), lambda i: (0, 0)),    # bias stays resident
        ],
        out_specs=pl.BlockSpec((tm, N), lambda i: (i, 0)),
        compiler_params=pltpu.CompilerParams(
            dimension_semantics=("parallel",),          # v7x: split tiles over 2 TCs
            vmem_limit_bytes=32 * 1024 * 1024,
        ),
        cost_estimate=cost,
    )(x, w, b)


# ---------------------------------------------------------------------------
# Pallas kernel 2: fused FC stack  relu(x @ W1 + b1) @ W2 + b2.
# The hidden activation h never leaves VMEM/vregs.
# ---------------------------------------------------------------------------
def _fc_fused_kernel(x_ref, w1_ref, b1_ref, w2_ref, b2_ref, o_ref):
    h = jnp.dot(x_ref[...], w1_ref[...], preferred_element_type=jnp.float32)
    h = jnp.maximum(h + b1_ref[...], 0.0).astype(jnp.bfloat16)
    o = jnp.dot(h, w2_ref[...], preferred_element_type=jnp.float32) + b2_ref[...]
    o_ref[...] = o.astype(o_ref.dtype)


def fc_fused(x, w1, b1, w2, b2, *, tile_m=None):
    """x: (B, D) -> (B, F) f32, both Linear layers in one pallas_call."""
    B, D = x.shape
    D2, H1 = w1.shape
    H1b, F = w2.shape
    assert D == D2 and H1 == H1b
    if tile_m is None:
        tile_m = _default_tile_m()

    if B <= tile_m:
        tb, grid = B, (1,)
    else:
        tb, grid = tile_m, (pl.cdiv(B, tile_m),)

    x = x.astype(jnp.bfloat16)
    cost = pl.CostEstimate(
        flops=2 * B * D * H1 + 2 * B * H1 * F,
        transcendentals=0,
        bytes_accessed=B * D * 2 + D * H1 * 2 + H1 * 4 + H1 * F * 2 + F * 4 + B * F * 4,
    )

    return pl.pallas_call(
        _fc_fused_kernel,
        out_shape=jax.ShapeDtypeStruct((B, F), jnp.float32),
        grid=grid,
        in_specs=[
            pl.BlockSpec((tb, D), lambda i: (i, 0)),
            pl.BlockSpec((D, H1), lambda i: (0, 0)),
            pl.BlockSpec((1, H1), lambda i: (0, 0)),
            pl.BlockSpec((H1, F), lambda i: (0, 0)),
            pl.BlockSpec((1, F), lambda i: (0, 0)),
        ],
        out_specs=pl.BlockSpec((tb, F), lambda i: (i, 0)),
        compiler_params=pltpu.CompilerParams(
            dimension_semantics=("parallel",),
            vmem_limit_bytes=32 * 1024 * 1024,
        ),
        cost_estimate=cost,
    )(x, w1, b1, w2, b2)


# ---------------------------------------------------------------------------
# Conv2d (valid padding) = im2col (XLA glue) + Pallas matmul kernel.
# ---------------------------------------------------------------------------
def _extract_patches_nhwc(x, ksize, stride):
    """x: (B, H, W, C) -> (B, Ho, Wo, ksize*ksize*C). Patch order: (kh, kw, c)."""
    B, H, W, C = x.shape
    Ho = (H - ksize) // stride + 1
    Wo = (W - ksize) // stride + 1
    cols = []
    for kh in range(ksize):
        for kw in range(ksize):
            sl = x[:, kh:kh + stride * (Ho - 1) + 1:stride,
                      kw:kw + stride * (Wo - 1) + 1:stride, :]
            cols.append(sl)
    return jnp.concatenate(cols, axis=-1), Ho, Wo


def conv2d_relu(x_nhwc, w_mat, b_row, *, cout, stride, tile_m=None):
    """Conv2d (no padding) + ReLU.

    x_nhwc: (B, H, W, Cin) bf16; w_mat: (9*Cin, Np) bf16 (Np = 128-padded Cout);
    b_row: (1, Np) f32.  Returns (B, Ho, Wo, cout) bf16.
    """
    # TODO(synk): the 3x3 window extraction stays as XLA strided-slice glue;
    # an in-kernel 9-shifted-matmul accumulation would remove the patch HBM pass.
    B = x_nhwc.shape[0]
    K, Np = w_mat.shape
    patches, Ho, Wo = _extract_patches_nhwc(x_nhwc, 3, stride)
    pm = patches.reshape(B * Ho * Wo, K)
    out = matmul_bias_act(pm, w_mat, b_row, relu=True,
                          out_dtype=jnp.bfloat16, tile_m=tile_m)
    return out.reshape(B, Ho, Wo, Np)[..., :cout]


# ---------------------------------------------------------------------------
# Module: ConvImageEncoder_1
# ---------------------------------------------------------------------------
# (cin, cout, stride) for the 4 conv layers of the module spec.
_CONV_CFG = ((3, 32, 2), (32, 32, 1), (32, 32, 2), (32, 32, 2))


def init_params(key, F_I, fcDim):
    """Deterministic PyTorch-default-style init: U(-1/sqrt(fan_in), 1/sqrt(fan_in))."""
    ks = jax.random.split(key, 12)

    def u(k, shape, fan_in):
        bound = 1.0 / (fan_in ** 0.5)
        return jax.random.uniform(k, shape, jnp.float32, -bound, bound)

    p = {}
    for i, (cin, cout, _) in enumerate(_CONV_CFG, start=1):
        fan_in = cin * 3 * 3
        p[f"c{i}_w"] = u(ks[2 * (i - 1)], (cout, cin, 3, 3), fan_in)
        p[f"c{i}_b"] = u(ks[2 * (i - 1) + 1], (cout,), fan_in)
    p["fc1_w"] = u(ks[8], (2 * F_I, fcDim), fcDim)
    p["fc1_b"] = u(ks[9], (2 * F_I,), fcDim)
    p["fc2_w"] = u(ks[10], (F_I, 2 * F_I), 2 * F_I)
    p["fc2_b"] = u(ks[11], (F_I,), 2 * F_I)
    return p


def prepare_params(params):
    """One-time weight prep: transpose to matmul layout, pad conv N to a
    lane-dense 128, cast matmul inputs to bf16 (biases stay f32)."""
    prep = {}
    for i, (cin, cout, _) in enumerate(_CONV_CFG, start=1):
        w = params[f"c{i}_w"]                   # (Cout, Cin, 3, 3) PyTorch layout
        b = params[f"c{i}_b"]                   # (Cout,)
        np_ = _round_up(cout, 128)
        # -> (kh, kw, Cin, Cout) flattened to match patch channel order (kh, kw, c).
        wm = jnp.transpose(w, (2, 3, 1, 0)).reshape(9 * cin, cout)
        prep[f"c{i}_w"] = jnp.pad(wm, ((0, 0), (0, np_ - cout))).astype(jnp.bfloat16)
        prep[f"c{i}_b"] = jnp.pad(b, (0, np_ - cout)).astype(jnp.float32)[None, :]
    # PyTorch Linear: y = x @ W.T + b, W is (out, in) -> store (in, out).
    prep["fc1_w"] = params["fc1_w"].T.astype(jnp.bfloat16)
    prep["fc1_b"] = params["fc1_b"].astype(jnp.float32)[None, :]
    prep["fc2_w"] = params["fc2_w"].T.astype(jnp.bfloat16)
    prep["fc2_b"] = params["fc2_b"].astype(jnp.float32)[None, :]
    return prep


def conv_image_encoder(prep, I, *, tile_m=None):
    """I: (B, C=3, H, W) NCHW (PyTorch convention). Returns (B, F_I) f32."""
    B = I.shape[0]
    x = jnp.transpose(I, (0, 2, 3, 1)).astype(jnp.bfloat16)   # NCHW -> NHWC, bf16
    for i, (_, cout, stride) in enumerate(_CONV_CFG, start=1):
        x = conv2d_relu(x, prep[f"c{i}_w"], prep[f"c{i}_b"],
                        cout=cout, stride=stride, tile_m=tile_m)
    # PyTorch `x.view(B, -1)` flattens NCHW -> (B, C*H*W): restore that order.
    x = jnp.transpose(x, (0, 3, 1, 2)).reshape(B, -1)
    # Fused fc: Linear + ReLU + Linear in a single Pallas kernel.
    return fc_fused(x, prep["fc1_w"], prep["fc1_b"],
                    prep["fc2_w"], prep["fc2_b"], tile_m=tile_m)


if __name__ == "__main__":
    # Small shapes: H=W=31 -> conv spatial 31 -> 15 -> 13 -> 6 -> 2,
    # so fcDim = 32 * 2 * 2 = 128.
    F_I = 32
    B, C, H, W = 2, 3, 31, 31
    fcDim = 32 * 2 * 2

    key = jax.random.PRNGKey(0)
    pkey, xkey = jax.random.split(key)
    params = init_params(pkey, F_I, fcDim)
    prep = prepare_params(params)
    I = jax.random.normal(xkey, (B, C, H, W), jnp.float32)

    fwd = jax.jit(conv_image_encoder)
    out = jax.block_until_ready(fwd(prep, I))
    assert out.shape == (B, F_I), out.shape
    assert jnp.all(jnp.isfinite(out))
    print("KERNEL_OK")
</pallas_src>

<mosaic_0001>
module attributes {stable_mosaic.version = 11 : i64} {
  func.func @_matmul_bias_act_kernel(%arg0: i32, %arg1: memref<450x27xbf16, #tpu.memory_space<vmem>>, %arg2: memref<27x128xbf16, #tpu.memory_space<vmem>>, %arg3: memref<1x128xf32, #tpu.memory_space<vmem>>, %arg4: memref<450x128xbf16, #tpu.memory_space<vmem>>) attributes {dimension_semantics = [#tpu.dimension_semantics<parallel>], iteration_bounds = array<i64: 1>, scalar_prefetch = 0 : i64, scratch_operands = 0 : i64, tpu.core_type = #tpu.core_type<tc>, window_params = [{transform_indices = @transform_0, window_bounds = array<i64: 450, 27>}, {pipeline_mode = #tpu.pipeline_mode<synchronous>, transform_indices = @transform_1, window_bounds = array<i64: 27, 128>}, {pipeline_mode = #tpu.pipeline_mode<synchronous>, transform_indices = @transform_2, window_bounds = array<i64: 1, 128>}, {transform_indices = @transform_3, window_bounds = array<i64: 450, 128>}]} {
    %c0 = arith.constant 0 : index
    %c0_0 = arith.constant 0 : index
    %0 = vector.load %arg1[%c0, %c0_0] : memref<450x27xbf16, #tpu.memory_space<vmem>>, vector<450x27xbf16>
    %c0_1 = arith.constant 0 : index
    %c0_2 = arith.constant 0 : index
    %1 = vector.load %arg2[%c0_1, %c0_2] : memref<27x128xbf16, #tpu.memory_space<vmem>>, vector<27x128xbf16>
    %cst = arith.constant dense<0.000000e+00> : vector<450x128xf32>
    %2 = tpu.matmul %0, %1, %cst {dimension_numbers = #tpu.dot_dimension_numbers<[1], [0], [0], [1], [0, 0, 1, 1], [], []>} : vector<450x27xbf16>, vector<27x128xbf16>, vector<450x128xf32> -> vector<450x128xf32>
    %c0_3 = arith.constant 0 : index
    %c0_4 = arith.constant 0 : index
    %3 = vector.load %arg3[%c0_3, %c0_4] : memref<1x128xf32, #tpu.memory_space<vmem>>, vector<1x128xf32>
    %4 = vector.broadcast %3 : vector<1x128xf32> to vector<450x128xf32>
    %5 = arith.addf %2, %4 : vector<450x128xf32>
    %cst_5 = arith.constant 0.000000e+00 : f32
    %6 = vector.broadcast %cst_5 : f32 to vector<450x128xf32>
    %7 = arith.maximumf %5, %6 : vector<450x128xf32>
    %8 = arith.truncf %7 : vector<450x128xf32> to vector<450x128xbf16>
    %c0_6 = arith.constant 0 : index
    %c0_7 = arith.constant 0 : index
    %9 = vector.load %arg4[%c0_6, %c0_7] : memref<450x128xbf16, #tpu.memory_space<vmem>>, vector<450x128xbf16>
    tpu.vector_store %arg4[%c0_6, %c0_7], %8 {strides = array<i32>} : memref<450x128xbf16, #tpu.memory_space<vmem>>, vector<450x128xbf16>,
    return
  }
  func.func @transform_0(%arg0: i32) -> (i32, i32) {
    %c0_i32 = arith.constant 0 : i32
    %c0_i32_0 = arith.constant 0 : i32
    return %arg0, %c0_i32 : i32, i32
  }
  func.func @transform_1(%arg0: i32) -> (i32, i32) {
    %c0_i32 = arith.constant 0 : i32
    %c0_i32_0 = arith.constant 0 : i32
    %c0_i32_1 = arith.constant 0 : i32
    return %c0_i32, %c0_i32_0 : i32, i32
  }
  func.func @transform_2(%arg0: i32) -> (i32, i32) {
    %c0_i32 = arith.constant 0 : i32
    %c0_i32_0 = arith.constant 0 : i32
    %c0_i32_1 = arith.constant 0 : i32
    return %c0_i32, %c0_i32_0 : i32, i32
  }
  func.func @transform_3(%arg0: i32) -> (i32, i32) {
    %c0_i32 = arith.constant 0 : i32
    %c0_i32_0 = arith.constant 0 : i32
    return %arg0, %c0_i32 : i32, i32
  }
}

module attributes {stable_mosaic.version = 11 : i64} {
  func.func @_matmul_bias_act_kernel(%arg0: i32, %arg1: memref<338x288xbf16, #tpu.memory_space<vmem>>, %arg2: memref<288x128xbf16, #tpu.memory_space<vmem>>, %arg3: memref<1x128xf32, #tpu.memory_space<vmem>>, %arg4: memref<338x128xbf16, #tpu.memory_space<vmem>>) attributes {dimension_semantics = [#tpu.dimension_semantics<parallel>], iteration_bounds = array<i64: 1>, scalar_prefetch = 0 : i64, scratch_operands = 0 : i64, tpu.core_type = #tpu.core_type<tc>, window_params = [{transform_indices = @transform_0, window_bounds = array<i64: 338, 288>}, {pipeline_mode = #tpu.pipeline_mode<synchronous>, transform_indices = @transform_1, window_bounds = array<i64: 288, 128>}, {pipeline_mode = #tpu.pipeline_mode<synchronous>, transform_indices = @transform_2, window_bounds = array<i64: 1, 128>}, {transform_indices = @transform_3, window_bounds = array<i64: 338, 128>}]} {
    %c0 = arith.constant 0 : index
    %c0_0 = arith.constant 0 : index
    %0 = vector.load %arg1[%c0, %c0_0] : memref<338x288xbf16, #tpu.memory_space<vmem>>, vector<338x288xbf16>
    %c0_1 = arith.constant 0 : index
    %c0_2 = arith.constant 0 : index
    %1 = vector.load %arg2[%c0_1, %c0_2] : memref<288x128xbf16, #tpu.memory_space<vmem>>, vector<288x128xbf16>
    %cst = arith.constant dense<0.000000e+00> : vector<338x128xf32>
    %2 = tpu.matmul %0, %1, %cst {dimension_numbers = #tpu.dot_dimension_numbers<[1], [0], [0], [1], [0, 0, 1, 1], [], []>} : vector<338x288xbf16>, vector<288x128xbf16>, vector<338x128xf32> -> vector<338x128xf32>
    %c0_3 = arith.constant 0 : index
    %c0_4 = arith.constant 0 : index
    %3 = vector.load %arg3[%c0_3, %c0_4] : memref<1x128xf32, #tpu.memory_space<vmem>>, vector<1x128xf32>
    %4 = vector.broadcast %3 : vector<1x128xf32> to vector<338x128xf32>
    %5 = arith.addf %2, %4 : vector<338x128xf32>
    %cst_5 = arith.constant 0.000000e+00 : f32
    %6 = vector.broadcast %cst_5 : f32 to vector<338x128xf32>
    %7 = arith.maximumf %5, %6 : vector<338x128xf32>
    %8 = arith.truncf %7 : vector<338x128xf32> to vector<338x128xbf16>
    %c0_6 = arith.constant 0 : index
    %c0_7 = arith.constant 0 : index
    %9 = vector.load %arg4[%c0_6, %c0_7] : memref<338x128xbf16, #tpu.memory_space<vmem>>, vector<338x128xbf16>
    tpu.vector_store %arg4[%c0_6, %c0_7], %8 {strides = array<i32>} : memref<338x128xbf16, #tpu.memory_space<vmem>>, vector<338x128xbf16>,
    return
  }
  func.func @transform_0(%arg0: i32) -> (i32, i32) {
    %c0_i32 = arith.constant 0 : i32
    %c0_i32_0 = arith.constant 0 : i32
    return %arg0, %c0_i32 : i32, i32
  }
  func.func @transform_1(%arg0: i32) -> (i32, i32) {
    %c0_i32 = arith.constant 0 : i32
    %c0_i32_0 = arith.constant 0 : i32
    %c0_i32_1 = arith.constant 0 : i32
    return %c0_i32, %c0_i32_0 : i32, i32
  }
  func.func @transform_2(%arg0: i32) -> (i32, i32) {
    %c0_i32 = arith.constant 0 : i32
    %c0_i32_0 = arith.constant 0 : i32
    %c0_i32_1 = arith.constant 0 : i32
    return %c0_i32, %c0_i32_0 : i32, i32
  }
  func.func @transform_3(%arg0: i32) -> (i32, i32) {
    %c0_i32 = arith.constant 0 : i32
    %c0_i32_0 = arith.constant 0 : i32
    return %arg0, %c0_i32 : i32, i32
  }
}

module attributes {stable_mosaic.version = 11 : i64} {
  func.func @_matmul_bias_act_kernel(%arg0: i32, %arg1: memref<72x288xbf16, #tpu.memory_space<vmem>>, %arg2: memref<288x128xbf16, #tpu.memory_space<vmem>>, %arg3: memref<1x128xf32, #tpu.memory_space<vmem>>, %arg4: memref<72x128xbf16, #tpu.memory_space<vmem>>) attributes {dimension_semantics = [#tpu.dimension_semantics<parallel>], iteration_bounds = array<i64: 1>, scalar_prefetch = 0 : i64, scratch_operands = 0 : i64, tpu.core_type = #tpu.core_type<tc>, window_params = [{transform_indices = @transform_0, window_bounds = array<i64: 72, 288>}, {pipeline_mode = #tpu.pipeline_mode<synchronous>, transform_indices = @transform_1, window_bounds = array<i64: 288, 128>}, {pipeline_mode = #tpu.pipeline_mode<synchronous>, transform_indices = @transform_2, window_bounds = array<i64: 1, 128>}, {transform_indices = @transform_3, window_bounds = array<i64: 72, 128>}]} {
    %c0 = arith.constant 0 : index
    %c0_0 = arith.constant 0 : index
    %0 = vector.load %arg1[%c0, %c0_0] : memref<72x288xbf16, #tpu.memory_space<vmem>>, vector<72x288xbf16>
    %c0_1 = arith.constant 0 : index
    %c0_2 = arith.constant 0 : index
    %1 = vector.load %arg2[%c0_1, %c0_2] : memref<288x128xbf16, #tpu.memory_space<vmem>>, vector<288x128xbf16>
    %cst = arith.constant dense<0.000000e+00> : vector<72x128xf32>
    %2 = tpu.matmul %0, %1, %cst {dimension_numbers = #tpu.dot_dimension_numbers<[1], [0], [0], [1], [0, 0, 1, 1], [], []>} : vector<72x288xbf16>, vector<288x128xbf16>, vector<72x128xf32> -> vector<72x128xf32>
    %c0_3 = arith.constant 0 : index
    %c0_4 = arith.constant 0 : index
    %3 = vector.load %arg3[%c0_3, %c0_4] : memref<1x128xf32, #tpu.memory_space<vmem>>, vector<1x128xf32>
    %4 = vector.broadcast %3 : vector<1x128xf32> to vector<72x128xf32>
    %5 = arith.addf %2, %4 : vector<72x128xf32>
    %cst_5 = arith.constant 0.000000e+00 : f32
    %6 = vector.broadcast %cst_5 : f32 to vector<72x128xf32>
    %7 = arith.maximumf %5, %6 : vector<72x128xf32>
    %8 = arith.truncf %7 : vector<72x128xf32> to vector<72x128xbf16>
    %c0_6 = arith.constant 0 : index
    %c0_7 = arith.constant 0 : index
    %9 = vector.load %arg4[%c0_6, %c0_7] : memref<72x128xbf16, #tpu.memory_space<vmem>>, vector<72x128xbf16>
    tpu.vector_store %arg4[%c0_6, %c0_7], %8 {strides = array<i32>} : memref<72x128xbf16, #tpu.memory_space<vmem>>, vector<72x128xbf16>,
    return
  }
  func.func @transform_0(%arg0: i32) -> (i32, i32) {
    %c0_i32 = arith.constant 0 : i32
    %c0_i32_0 = arith.constant 0 : i32
    return %arg0, %c0_i32 : i32, i32
  }
  func.func @transform_1(%arg0: i32) -> (i32, i32) {
    %c0_i32 = arith.constant 0 : i32
    %c0_i32_0 = arith.constant 0 : i32
    %c0_i32_1 = arith.constant 0 : i32
    return %c0_i32, %c0_i32_0 : i32, i32
  }
  func.func @transform_2(%arg0: i32) -> (i32, i32) {
    %c0_i32 = arith.constant 0 : i32
    %c0_i32_0 = arith.constant 0 : i32
    %c0_i32_1 = arith.constant 0 : i32
    return %c0_i32, %c0_i32_0 : i32, i32
  }
  func.func @transform_3(%arg0: i32) -> (i32, i32) {
    %c0_i32 = arith.constant 0 : i32
    %c0_i32_0 = arith.constant 0 : i32
    return %arg0, %c0_i32 : i32, i32
  }
}

module attributes {stable_mosaic.version = 11 : i64} {
  func.func @_fc_fused_kernel(%arg0: i32, %arg1: memref<2x128xbf16, #tpu.memory_space<vmem>>, %arg2: memref<128x64xbf16, #tpu.memory_space<vmem>>, %arg3: memref<1x64xf32, #tpu.memory_space<vmem>>, %arg4: memref<64x32xbf16, #tpu.memory_space<vmem>>, %arg5: memref<1x32xf32, #tpu.memory_space<vmem>>, %arg6: memref<2x32xf32, #tpu.memory_space<vmem>>) attributes {dimension_semantics = [#tpu.dimension_semantics<parallel>], iteration_bounds = array<i64: 1>, scalar_prefetch = 0 : i64, scratch_operands = 0 : i64, tpu.core_type = #tpu.core_type<tc>, window_params = [{transform_indices = @transform_0, window_bounds = array<i64: 2, 128>}, {pipeline_mode = #tpu.pipeline_mode<synchronous>, transform_indices = @transform_1, window_bounds = array<i64: 128, 64>}, {pipeline_mode = #tpu.pipeline_mode<synchronous>, transform_indices = @transform_2, window_bounds = array<i64: 1, 64>}, {pipeline_mode = #tpu.pipeline_mode<synchronous>, transform_indices = @transform_3, window_bounds = array<i64: 64, 32>}, {pipeline_mode = #tpu.pipeline_mode<synchronous>, transform_indices = @transform_4, window_bounds = array<i64: 1, 32>}, {transform_indices = @transform_5, window_bounds = array<i64: 2, 32>}]} {
    %c0 = arith.constant 0 : index
    %c0_0 = arith.constant 0 : index
    %0 = vector.load %arg1[%c0, %c0_0] : memref<2x128xbf16, #tpu.memory_space<vmem>>, vector<2x128xbf16>
    %c0_1 = arith.constant 0 : index
    %c0_2 = arith.constant 0 : index
    %1 = vector.load %arg2[%c0_1, %c0_2] : memref<128x64xbf16, #tpu.memory_space<vmem>>, vector<128x64xbf16>
    %cst = arith.constant dense<0.000000e+00> : vector<2x64xf32>
    %2 = tpu.matmul %0, %1, %cst {dimension_numbers = #tpu.dot_dimension_numbers<[1], [0], [0], [1], [0, 0, 1, 1], [], []>} : vector<2x128xbf16>, vector<128x64xbf16>, vector<2x64xf32> -> vector<2x64xf32>
    %c0_3 = arith.constant 0 : index
    %c0_4 = arith.constant 0 : index
    %3 = vector.load %arg3[%c0_3, %c0_4] : memref<1x64xf32, #tpu.memory_space<vmem>>, vector<1x64xf32>
    %4 = vector.broadcast %3 : vector<1x64xf32> to vector<2x64xf32>
    %5 = arith.addf %2, %4 : vector<2x64xf32>
    %cst_5 = arith.constant 0.000000e+00 : f32
    %6 = vector.broadcast %cst_5 : f32 to vector<2x64xf32>
    %7 = arith.maximumf %5, %6 : vector<2x64xf32>
    %8 = arith.truncf %7 : vector<2x64xf32> to vector<2x64xbf16>
    %c0_6 = arith.constant 0 : index
    %c0_7 = arith.constant 0 : index
    %9 = vector.load %arg4[%c0_6, %c0_7] : memref<64x32xbf16, #tpu.memory_space<vmem>>, vector<64x32xbf16>
    %cst_8 = arith.constant dense<0.000000e+00> : vector<2x32xf32>
    %10 = tpu.matmul %8, %9, %cst_8 {dimension_numbers = #tpu.dot_dimension_numbers<[1], [0], [0], [1], [0, 0, 1, 1], [], []>} : vector<2x64xbf16>, vector<64x32xbf16>, vector<2x32xf32> -> vector<2x32xf32>
    %c0_9 = arith.constant 0 : index
    %c0_10 = arith.constant 0 : index
    %11 = vector.load %arg5[%c0_9, %c0_10] : memref<1x32xf32, #tpu.memory_space<vmem>>, vector<1x32xf32>
    %12 = vector.broadcast %11 : vector<1x32xf32> to vector<2x32xf32>
    %13 = arith.addf %10, %12 : vector<2x32xf32>
    %c0_11 = arith.constant 0 : index
    %c0_12 = arith.constant 0 : index
    %14 = vector.load %arg6[%c0_11, %c0_12] : memref<2x32xf32, #tpu.memory_space<vmem>>, vector<2x32xf32>
    tpu.vector_store %arg6[%c0_11, %c0_12], %13 {strides = array<i32>} : memref<2x32xf32, #tpu.memory_space<vmem>>, vector<2x32xf32>,
    return
  }
  func.func @transform_0(%arg0: i32) -> (i32, i32) {
    %c0_i32 = arith.constant 0 : i32
    %c0_i32_0 = arith.constant 0 : i32
    return %arg0, %c0_i32 : i32, i32
  }
  func.func @transform_1(%arg0: i32) -> (i32, i32) {
    %c0_i32 = arith.constant 0 : i32
    %c0_i32_0 = arith.constant 0 : i32
    %c0_i32_1 = arith.constant 0 : i32
    return %c0_i32, %c0_i32_0 : i32, i32
  }
  func.func @transform_2(%arg0: i32) -> (i32, i32) {
    %c0_i32 = arith.constant 0 : i32
    %c0_i32_0 = arith.constant 0 : i32
    %c0_i32_1 = arith.constant 0 : i32
    return %c0_i32, %c0_i32_0 : i32, i32
  }
  func.func @transform_3(%arg0: i32) -> (i32, i32) {
    %c0_i32 = arith.constant 0 : i32
    %c0_i32_0 = arith.constant 0 : i32
    %c0_i32_1 = arith.constant 0 : i32
    return %c0_i32, %c0_i32_0 : i32, i32
  }
  func.func @transform_4(%arg0: i32) -> (i32, i32) {
    %c0_i32 = arith.constant 0 : i32
    %c0_i32_0 = arith.constant 0 : i32
    %c0_i32_1 = arith.constant 0 : i32
    return %c0_i32, %c0_i32_0 : i32, i32
  }
  func.func @transform_5(%arg0: i32) -> (i32, i32) {
    %c0_i32 = arith.constant 0 : i32
    %c0_i32_0 = arith.constant 0 : i32
    return %arg0, %c0_i32 : i32, i32
  }
}

module attributes {stable_mosaic.version = 11 : i64} {
  func.func @_matmul_bias_act_kernel(%arg0: i32, %arg1: memref<8x288xbf16, #tpu.memory_space<vmem>>, %arg2: memref<288x128xbf16, #tpu.memory_space<vmem>>, %arg3: memref<1x128xf32, #tpu.memory_space<vmem>>, %arg4: memref<8x128xbf16, #tpu.memory_space<vmem>>) attributes {dimension_semantics = [#tpu.dimension_semantics<parallel>], iteration_bounds = array<i64: 1>, scalar_prefetch = 0 : i64, scratch_operands = 0 : i64, tpu.core_type = #tpu.core_type<tc>, window_params = [{transform_indices = @transform_0, window_bounds = array<i64: 8, 288>}, {pipeline_mode = #tpu.pipeline_mode<synchronous>, transform_indices = @transform_1, window_bounds = array<i64: 288, 128>}, {pipeline_mode = #tpu.pipeline_mode<synchronous>, transform_indices = @transform_2, window_bounds = array<i64: 1, 128>}, {transform_indices = @transform_3, window_bounds = array<i64: 8, 128>}]} {
    %c0 = arith.constant 0 : index
    %c0_0 = arith.constant 0 : index
    %0 = vector.load %arg1[%c0, %c0_0] : memref<8x288xbf16, #tpu.memory_space<vmem>>, vector<8x288xbf16>
    %c0_1 = arith.constant 0 : index
    %c0_2 = arith.constant 0 : index
    %1 = vector.load %arg2[%c0_1, %c0_2] : memref<288x128xbf16, #tpu.memory_space<vmem>>, vector<288x128xbf16>
    %cst = arith.constant dense<0.000000e+00> : vector<8x128xf32>
    %2 = tpu.matmul %0, %1, %cst {dimension_numbers = #tpu.dot_dimension_numbers<[1], [0], [0], [1], [0, 0, 1, 1], [], []>} : vector<8x288xbf16>, vector<288x128xbf16>, vector<8x128xf32> -> vector<8x128xf32>
    %c0_3 = arith.constant 0 : index
    %c0_4 = arith.constant 0 : index
    %3 = vector.load %arg3[%c0_3, %c0_4] : memref<1x128xf32, #tpu.memory_space<vmem>>, vector<1x128xf32>
    %4 = vector.broadcast %3 : vector<1x128xf32> to vector<8x128xf32>
    %5 = arith.addf %2, %4 : vector<8x128xf32>
    %cst_5 = arith.constant 0.000000e+00 : f32
    %6 = vector.broadcast %cst_5 : f32 to vector<8x128xf32>
    %7 = arith.maximumf %5, %6 : vector<8x128xf32>
    %8 = arith.truncf %7 : vector<8x128xf32> to vector<8x128xbf16>
    %c0_6 = arith.constant 0 : index
    %c0_7 = arith.constant 0 : index
    %9 = vector.load %arg4[%c0_6, %c0_7] : memref<8x128xbf16, #tpu.memory_space<vmem>>, vector<8x128xbf16>
    tpu.vector_store %arg4[%c0_6, %c0_7], %8 {strides = array<i32>} : memref<8x128xbf16, #tpu.memory_space<vmem>>, vector<8x128xbf16>,
    return
  }
  func.func @transform_0(%arg0: i32) -> (i32, i32) {
    %c0_i32 = arith.constant 0 : i32
    %c0_i32_0 = arith.constant 0 : i32
    return %arg0, %c0_i32 : i32, i32
  }
  func.func @transform_1(%arg0: i32) -> (i32, i32) {
    %c0_i32 = arith.constant 0 : i32
    %c0_i32_0 = arith.constant 0 : i32
    %c0_i32_1 = arith.constant 0 : i32
    return %c0_i32, %c0_i32_0 : i32, i32
  }
  func.func @transform_2(%arg0: i32) -> (i32, i32) {
    %c0_i32 = arith.constant 0 : i32
    %c0_i32_0 = arith.constant 0 : i32
    %c0_i32_1 = arith.constant 0 : i32
    return %c0_i32, %c0_i32_0 : i32, i32
  }
  func.func @transform_3(%arg0: i32) -> (i32, i32) {
    %c0_i32 = arith.constant 0 : i32
    %c0_i32_0 = arith.constant 0 : i32
    return %arg0, %c0_i32 : i32, i32
  }
}

</mosaic_0001>

<llo_original>
// kernel: conv_image_encoder.5
$region0: #{conv_image_encoder.5}
  #allocation0 [shape = 'u32[]', space=smem, size = 0x4, offset = 0x4, fixed_abs, tag = 'smem constant byte address 0x4 - core index']
  #allocation1 [shape = 'u32[72,128]{1,0:T(1,128)}', space=vmem, size = 0x9000, scoped, tag = 'internal scratch']
  %s0 = inlined_call_operand.vmem [shape: bf16[450,27], index: 0, kind: input, shape index: {}]
  %s1 = inlined_call_operand.vmem [shape: bf16[27,128], index: 1, kind: input, shape index: {}]
  %s2 = inlined_call_operand.vmem [shape: f32[1,128], index: 2, kind: input, shape index: {}]
  %s3 = inlined_call_operand.vmem [shape: bf16[450,128], index: 3, kind: output, shape index: {}]
  %s4 = sld [smem:[#allocation0]]
  $region22: #{conv_image_encoder.5} parent=0
    _
  %s6 = ssub.s32 1, %s4
  %s7 = scalar_select 0, %s6, %s4
  // Predicated region
  $region2: #{conv_image_encoder.5} parent=0 // pred_check
    _
  $region3: #{conv_image_encoder.5} parent=0 // pred_check_branch
    %9 = sbr.rel (0) target = $region5
  $region4: #{conv_image_encoder.5} parent=0 // pred_region
    _
  $region5: #{conv_image_encoder.5} parent=0 // pred_fallthru
    _
  // Predicated region
  $region6: #{conv_image_encoder.5} parent=0 // pred_check
    _
  $region7: #{conv_image_encoder.5} parent=0 // pred_check_branch
    %11 = sbr.rel (0) target = $region9
  $region8: #{conv_image_encoder.5} parent=0 // pred_region
    _
  $region9: #{conv_image_encoder.5} parent=0 // pred_fallthru
    _
  // Predicated region
  $region10: #{conv_image_encoder.5} parent=0 // pred_check
    _
  $region11: #{conv_image_encoder.5} parent=0 // pred_check_branch
    %13 = sbr.rel (0) target = $region13
  $region12: #{conv_image_encoder.5} parent=0 // pred_region
    _
  $region13: #{conv_image_encoder.5} parent=0 // pred_fallthru
    _
  %v15 = vld [vmem:[%s0] sm:$0xf]
  %v16 = vld [vmem:[%s0 + $0x4] sm:$0xf]
  %v17 = vld [vmem:[%s0 + $0x8] sm:$0xf]
  %v18 = vld [vmem:[%s0 + $0xc] sm:$0xf]
  %v19 = vld [vmem:[%s0 + $0x10] sm:$0xf]
  %v20 = vld [vmem:[%s0 + $0x14] sm:$0xf]
  %v21 = vld [vmem:[%s0 + $0x18] sm:$0xf]
  %v22 = vld [vmem:[%s0 + $0x1c] sm:$0xf]
  %v23 = vld [vmem:[%s0 + $0x20] sm:$0xf]
  %v24 = vld [vmem:[%s0 + $0x24] sm:$0xf]
  %v25 = vld [vmem:[%s0 + $0x28] sm:$0xf]
  %v26 = vld [vmem:[%s0 + $0x2c] sm:$0xf]
  %v27 = vld [vmem:[%s0 + $0x30] sm:$0xf]
  %v28 = vld [vmem:[%s0 + $0x34] sm:$0xf]
  %v29 = vld [vmem:[%s0 + $0x38] sm:$0xf]
  %v30 = vld [vmem:[%s0 + $0x3c] sm:$0xf]
  %v31 = vld [vmem:[%s0 + $0x40] sm:$0xf]
  %v32 = vld [vmem:[%s0 + $0x44] sm:$0xf]
  %v33 = vld [vmem:[%s0 + $0x48] sm:$0xf]
  %v34 = vld [vmem:[%s0 + $0x4c] sm:$0xf]
  %v35 = vld [vmem:[%s0 + $0x50] sm:$0xf]
  %v36 = vld [vmem:[%s0 + $0x54] sm:$0xf]
  %v37 = vld [vmem:[%s0 + $0x58] sm:$0xf]
  %v38 = vld [vmem:[%s0 + $0x5c] sm:$0xf]
  %v39 = vld [vmem:[%s0 + $0x60] sm:$0xf]
  %v40 = vld [vmem:[%s0 + $0x64] sm:$0xf]
  %v41 = vld [vmem:[%s0 + $0x68] sm:$0xf]
  %v42 = vld [vmem:[%s0 + $0x6c] sm:$0xf]
  %v43 = vld [vmem:[%s0 + $0x70] sm:$0xf]
  %v44 = vld [vmem:[%s0 + $0x74] sm:$0xf]
  %v45 = vld [vmem:[%s0 + $0x78] sm:$0xf]
  %v46 = vld [vmem:[%s0 + $0x7c] sm:$0xf]
  %v47 = vld [vmem:[%s0 + $0x80] sm:$0xf]
  %v48 = vld [vmem:[%s0 + $0x84] sm:$0xf]
  %v49 = vld [vmem:[%s0 + $0x88] sm:$0xf]
  %v50 = vld [vmem:[%s0 + $0x8c] sm:$0xf]
  %v51 = vld [vmem:[%s0 + $0x90] sm:$0xf]
  %v52 = vld [vmem:[%s0 + $0x94] sm:$0xf]
  %v53 = vld [vmem:[%s0 + $0x98] sm:$0xf]
  %v54 = vld [vmem:[%s0 + $0x9c] sm:$0xf]
  %v55 = vld [vmem:[%s0 + $0xa0] sm:$0xf]
  %v56 = vld [vmem:[%s0 + $0xa4] sm:$0xf]
  %v57 = vld [vmem:[%s0 + $0xa8] sm:$0xf]
  %v58 = vld [vmem:[%s0 + $0xac] sm:$0xf]
  %v59 = vld [vmem:[%s0 + $0xb0] sm:$0xf]
  %v60 = vld [vmem:[%s0 + $0xb4] sm:$0xf]
  %v61 = vld [vmem:[%s0 + $0xb8] sm:$0xf]
  %v62 = vld [vmem:[%s0 + $0xbc] sm:$0xf]
  %v63 = vld [vmem:[%s0 + $0xc0] sm:$0xf]
  %v64 = vld [vmem:[%s0 + $0xc4] sm:$0xf]
  %v65 = vld [vmem:[%s0 + $0xc8] sm:$0xf]
  %v66 = vld [vmem:[%s0 + $0xcc] sm:$0xf]
  %v67 = vld [vmem:[%s0 + $0xd0] sm:$0xf]
  %v68 = vld [vmem:[%s0 + $0xd4] sm:$0xf]
  %v69 = vld [vmem:[%s0 + $0xd8] sm:$0xf]
  %v70 = vld [vmem:[%s0 + $0xdc] sm:$0xf]
  %v71 = vld [vmem:[%s0 + $0xe0] sm:$0x1]
  %v72 = vld [vmem:[%s1] sm:$0xf]
  %v73 = vld [vmem:[%s1 + $0x4] sm:$0xf]
  %v74 = vld [vmem:[%s1 + $0x8] sm:$0xf]
  %v75 = vld [vmem:[%s1 + $0xc] sm:$0x3]
  %v76 = vld [vmem:[%s2] sm:$0x1]
  %v78 = vperm.slane %v76, 0
  %v137 = vunpack.c.l.b16 %v15
  %v138 = vunpack.c.l.b16 %v16
  %v139 = vunpack.c.l.b16 %v17
  %v140 = vunpack.c.l.b16 %v18
  %v141 = vunpack.c.l.b16 %v19
  %v142 = vunpack.c.l.b16 %v20
  %v143 = vunpack.c.l.b16 %v21
  %v144 = vunpack.c.l.b16 %v22
  %v145 = vunpack.c.l.b16 %v23
  %v146 = vunpack.c.l.b16 %v24
  %v147 = vunpack.c.l.b16 %v25
  %v148 = vunpack.c.l.b16 %v26
  %v149 = vunpack.c.l.b16 %v27
  %v150 = vunpack.c.l.b16 %v28
  %v151 = vunpack.c.l.b16 %v29
  %v152 = vunpack.c.l.b16 %v30
  %v153 = vunpack.c.l.b16 %v31
  %v154 = vunpack.c.l.b16 %v32
  %v155 = vunpack.c.l.b16 %v33
  %v156 = vunpack.c.l.b16 %v34
  %v157 = vunpack.c.l.b16 %v35
  %v158 = vunpack.c.l.b16 %v36
  %v159 = vunpack.c.l.b16 %v37
  %v160 = vunpack.c.l.b16 %v38
  %v161 = vunpack.c.l.b16 %v39
  %v162 = vunpack.c.l.b16 %v40
  %v163 = vunpack.c.l.b16 %v41
  %v164 = vunpack.c.l.b16 %v42
  %v165 = vunpack.c.l.b16 %v43
  %v166 = vunpack.c.l.b16 %v44
  %v167 = vunpack.c.l.b16 %v45
  %v168 = vunpack.c.l.b16 %v46
  %v169 = vunpack.c.l.b16 %v47
  %v170 = vunpack.c.l.b16 %v48
  %v171 = vunpack.c.l.b16 %v49
  %v172 = vunpack.c.l.b16 %v50
  %v173 = vunpack.c.l.b16 %v51
  %v174 = vunpack.c.l.b16 %v52
  %v175 = vunpack.c.l.b16 %v53
  %v176 = vunpack.c.l.b16 %v54
  %v177 = vunpack.c.l.b16 %v55
  %v178 = vunpack.c.l.b16 %v56
  %v179 = vunpack.c.l.b16 %v57
  %v180 = vunpack.c.l.b16 %v58
  %v181 = vunpack.c.l.b16 %v59
  %v182 = vunpack.c.l.b16 %v60
  %v183 = vunpack.c.l.b16 %v61
  %v184 = vunpack.c.l.b16 %v62
  %v185 = vunpack.c.l.b16 %v63
  %v186 = vunpack.c.l.b16 %v64
  %v187 = vunpack.c.l.b16 %v65
  %v188 = vunpack.c.l.b16 %v66
  %v189 = vunpack.c.l.b16 %v67
  %v190 = vunpack.c.l.b16 %v68
  %v191 = vunpack.c.l.b16 %v69
  %v192 = vunpack.c.l.b16 %v70
  %v193 = vunpack.c.l.b16 %v71
  %v194 = vpack.c.b16 %v138, %v137
  %v195 = vpack.c.b16 %v140, %v139
  %v196 = vpack.c.b16 %v142, %v141
  %v197 = vpack.c.b16 %v144, %v143
  %v198 = vpack.c.b16 %v146, %v145
  %v199 = vpack.c.b16 %v148, %v147
  %v200 = vpack.c.b16 %v150, %v149
  %v201 = vpack.c.b16 %v152, %v151
  %v202 = vpack.c.b16 %v154, %v153
  %v203 = vpack.c.b16 %v156, %v155
  %v204 = vpack.c.b16 %v158, %v157
  %v205 = vpack.c.b16 %v160, %v159
  %v206 = vpack.c.b16 %v162, %v161
  %v207 = vpack.c.b16 %v164, %v163
  %v208 = vpack.c.b16 %v166, %v165
  %v209 = vpack.c.b16 %v168, %v167
  %v210 = vpack.c.b16 %v170, %v169
  %v211 = vpack.c.b16 %v172, %v171
  %v212 = vpack.c.b16 %v174, %v173
  %v213 = vpack.c.b16 %v176, %v175
  %v214 = vpack.c.b16 %v178, %v177
  %v215 = vpack.c.b16 %v180, %v179
  %v216 = vpack.c.b16 %v182, %v181
  %v217 = vpack.c.b16 %v184, %v183
  %v218 = vpack.c.b16 %v186, %v185
  %v219 = vpack.c.b16 %v188, %v187
  %v220 = vpack.c.b16 %v190, %v189
  %v221 = vpack.c.b16 %v192, %v191
  %v222 = vpack.c.b16 %v193, %v193
  %v227 = vunpack.c.l.b16 %v72
  %v228 = vunpack.c.l.b16 %v73
  %v229 = vunpack.c.l.b16 %v74
  %v230 = vunpack.c.l.b16 %v75
  %v231 = vpack.c.b16 %v228, %v227
  %v232 = vpack.c.b16 %v230, %v229
  %vm234 = vcmask 220160
  %v236 = vsel %vm234, %v194, 0
  %v239 = vsel %vm234, %v195, 0
  %v242 = vsel %vm234, %v196, 0
  %v245 = vsel %vm234, %v197, 0
  %v248 = vsel %vm234, %v198, 0
  %v251 = vsel %vm234, %v199, 0
  %v254 = vsel %vm234, %v200, 0
  %v257 = vsel %vm234, %v201, 0
  %v260 = vsel %vm234, %v202, 0
  %v263 = vsel %vm234, %v203, 0
  %v266 = vsel %vm234, %v204, 0
  %v269 = vsel %vm234, %v205, 0
  %v272 = vsel %vm234, %v206, 0
  %v275 = vsel %vm234, %v207, 0
  %v278 = vsel %vm234, %v208, 0
  %v281 = vsel %vm234, %v209, 0
  %v284 = vsel %vm234, %v210, 0
  %v287 = vsel %vm234, %v211, 0
  %v290 = vsel %vm234, %v212, 0
  %v293 = vsel %vm234, %v213, 0
  %v296 = vsel %vm234, %v214, 0
  %v299 = vsel %vm234, %v215, 0
  %v302 = vsel %vm234, %v216, 0
  %v305 = vsel %vm234, %v217, 0
  %v308 = vsel %vm234, %v218, 0
  %v311 = vsel %vm234, %v219, 0
  %v314 = vsel %vm234, %v220, 0
  %v317 = vsel %vm234, %v221, 0
  %v320 = vsel %vm234, %v222, 0
  %vm322 = vcmask 1044480
  %vm323 = vcmask 1045504
  %v324 = vsel %vm322, 4294967295, 65535
  %v325 = vsel %vm323, %v324, 0
  %v327 = vand.u32 %v232, %v325
  %329 = vmatpush.bf16.msra.mxu0 0
  %330 = vmatpush.bf16.msra.mxu0 0
  %331 = vmatpush.bf16.msra.mxu0 0
  %332 = vmatpush.bf16.msra.mxu0 0
  %333 = vmatpush.bf16.msra.mxu0 0
  %334 = vmatpush.bf16.msra.mxu0 0
  %335 = vmatpush.bf16.msra.mxu0 %v327
  %336 = vmatpush.bf16.msra.mxu0 %v231
  %337 = vmatmul.bf16.gmra.mxu0 %v236
  %v338 = vpop.f32.mrf.mxu0
  %v339 = vadd.f32 %v78, %v338
  %v340 = vpop.f32.mrf.mxu0
  %v341 = vadd.f32 %v78, %v340
  %342 = vmatmul.bf16.gmra.mxu0 %v239
  %v343 = vpop.f32.mrf.mxu0
  %v344 = vadd.f32 %v78, %v343
  %v345 = vpop.f32.mrf.mxu0
  %v346 = vadd.f32 %v78, %v345
  %347 = vmatmul.bf16.gmra.mxu0 %v242
  %v348 = vpop.f32.mrf.mxu0
  %v349 = vadd.f32 %v78, %v348
  %v350 = vpop.f32.mrf.mxu0
  %v351 = vadd.f32 %v78, %v350
  %352 = vmatmul.bf16.gmra.mxu0 %v245
  %v353 = vpop.f32.mrf.mxu0
  %v354 = vadd.f32 %v78, %v353
  %v355 = vpop.f32.mrf.mxu0
  %v356 = vadd.f32 %v78, %v355
  %357 = vmatmul.bf16.gmra.mxu0 %v248
  %v358 = vpop.f32.mrf.mxu0
  %v359 = vadd.f32 %v78, %v358
  %v360 = vpop.f32.mrf.mxu0
  %v361 = vadd.f32 %v78, %v360
  %362 = vmatmul.bf16.gmra.mxu0 %v251
  %v363 = vpop.f32.mrf.mxu0
  %v364 = vadd.f32 %v78, %v363
  %v365 = vpop.f32.mrf.mxu0
  %v366 = vadd.f32 %v78, %v365
  %367 = vmatmul.bf16.gmra.mxu0 %v254
  %v368 = vpop.f32.mrf.mxu0
  %v369 = vadd.f32 %v78, %v368
  %v370 = vpop.f32.mrf.mxu0
  %v371 = vadd.f32 %v78, %v370
  %372 = vmatmul.bf16.gmra.mxu0 %v257
  %v373 = vpop.f32.mrf.mxu0
  %v374 = vadd.f32 %v78, %v373
  %v375 = vpop.f32.mrf.mxu0
  %v376 = vadd.f32 %v78, %v375
  %377 = vmatmul.bf16.gmra.mxu0 %v260
  %v378 = vpop.f32.mrf.mxu0
  %v379 = vadd.f32 %v78, %v378
  %v380 = vpop.f32.mrf.mxu0
  %v381 = vadd.f32 %v78, %v380
  %382 = vmatmul.bf16.gmra.mxu0 %v263
  %v383 = vpop.f32.mrf.mxu0
  %v384 = vadd.f32 %v78, %v383
  %v385 = vpop.f32.mrf.mxu0
  %v386 = vadd.f32 %v78, %v385
  %387 = vmatmul.bf16.gmra.mxu0 %v266
  %v388 = vpop.f32.mrf.mxu0
  %v389 = vadd.f32 %v78, %v388
  %v390 = vpop.f32.mrf.mxu0
  %v391 = vadd.f32 %v78, %v390
  %392 = vmatmul.bf16.gmra.mxu0 %v269
  %v393 = vpop.f32.mrf.mxu0
  %v394 = vadd.f32 %v78, %v393
  %v395 = vpop.f32.mrf.mxu0
  %v396 = vadd.f32 %v78, %v395
  %397 = vmatmul.bf16.gmra.mxu0 %v272
  %v398 = vpop.f32.mrf.mxu0
  %v399 = vadd.f32 %v78, %v398
  %v400 = vpop.f32.mrf.mxu0
  %v401 = vadd.f32 %v78, %v400
  %402 = vmatmul.bf16.gmra.mxu0 %v275
  %v403 = vpop.f32.mrf.mxu0
  %v404 = vadd.f32 %v78, %v403
  %v405 = vpop.f32.mrf.mxu0
  %v406 = vadd.f32 %v78, %v405
  %407 = vmatmul.bf16.gmra.mxu0 %v278
  %v408 = vpop.f32.mrf.mxu0
  %v409 = vadd.f32 %v78, %v408
  %v410 = vpop.f32.mrf.mxu0
  %v411 = vadd.f32 %v78, %v410
  %412 = vmatmul.bf16.gmra.mxu0 %v281
  %v413 = vpop.f32.mrf.mxu0
  %v414 = vadd.f32 %v78, %v413
  %v415 = vpop.f32.mrf.mxu0
  %v416 = vadd.f32 %v78, %v415
  %417 = vmatmul.bf16.gmra.mxu0 %v284
  %v418 = vpop.f32.mrf.mxu0
  %v419 = vadd.f32 %v78, %v418
  %v420 = vpop.f32.mrf.mxu0
  %v421 = vadd.f32 %v78, %v420
  %422 = vmatmul.bf16.gmra.mxu0 %v287
  %v423 = vpop.f32.mrf.mxu0
  %v424 = vadd.f32 %v78, %v423
  %v425 = vpop.f32.mrf.mxu0
  %v426 = vadd.f32 %v78, %v425
  %427 = vmatmul.bf16.gmra.mxu0 %v290
  %v428 = vpop.f32.mrf.mxu0
  %v429 = vadd.f32 %v78, %v428
  %v430 = vpop.f32.mrf.mxu0
  %v431 = vadd.f32 %v78, %v430
  %432 = vmatmul.bf16.gmra.mxu0 %v293
  %v433 = vpop.f32.mrf.mxu0
  %v434 = vadd.f32 %v78, %v433
  %v435 = vpop.f32.mrf.mxu0
  %v436 = vadd.f32 %v78, %v435
  %437 = vmatmul.bf16.gmra.mxu0 %v296
  %v438 = vpop.f32.mrf.mxu0
  %v439 = vadd.f32 %v78, %v438
  %v440 = vpop.f32.mrf.mxu0
  %v441 = vadd.f32 %v78, %v440
  %442 = vmatmul.bf16.gmra.mxu0 %v299
  %v443 = vpop.f32.mrf.mxu0
  %v444 = vadd.f32 %v78, %v443
  %v445 = vpop.f32.mrf.mxu0
  %v446 = vadd.f32 %v78, %v445
  %447 = vmatmul.bf16.gmra.mxu0 %v302
  %v448 = vpop.f32.mrf.mxu0
  %v449 = vadd.f32 %v78, %v448
  %v450 = vpop.f32.mrf.mxu0
  %v451 = vadd.f32 %v78, %v450
  %452 = vmatmul.bf16.gmra.mxu0 %v305
  %v453 = vpop.f32.mrf.mxu0
  %v454 = vadd.f32 %v78, %v453
  %v455 = vpop.f32.mrf.mxu0
  %v456 = vadd.f32 %v78, %v455
  %457 = vmatmul.bf16.gmra.mxu0 %v308
  %v458 = vpop.f32.mrf.mxu0
  %v459 = vadd.f32 %v78, %v458
  %v460 = vpop.f32.mrf.mxu0
  %v461 = vadd.f32 %v78, %v460
  %462 = vmatmul.bf16.gmra.mxu0 %v311
  %v463 = vpop.f32.mrf.mxu0
  %v464 = vadd.f32 %v78, %v463
  %v465 = vpop.f32.mrf.mxu0
  %v466 = vadd.f32 %v78, %v465
  %467 = vmatmul.bf16.gmra.mxu0 %v314
  %v468 = vpop.f32.mrf.mxu0
  %v469 = vadd.f32 %v78, %v468
  %v470 = vpop.f32.mrf.mxu0
  %v471 = vadd.f32 %v78, %v470
  %472 = vmatmul.bf16.gmra.mxu0 %v317
  %v473 = vpop.f32.mrf.mxu0
  %v474 = vadd.f32 %v78, %v473
  %v475 = vpop.f32.mrf.mxu0
  %v476 = vadd.f32 %v78, %v475
  %477 = vmatmul.bf16.gmra.mxu0 %v320
  %v478 = vpop.f32.mrf.mxu0
  %v479 = vadd.f32 %v78, %v478
  %v480 = vpop.f32.mrf.mxu0
  %481 = vdwg.mxu0
  %v482 = vmax.f32 %v339, 0.0
  %v483 = vmax.f32 %v341, 0.0
  %v484 = vmax.f32 %v344, 0.0
  %v485 = vmax.f32 %v346, 0.0
  %v486 = vmax.f32 %v349, 0.0
  %v487 = vmax.f32 %v351, 0.0
  %v488 = vmax.f32 %v354, 0.0
  %v489 = vmax.f32 %v356, 0.0
  %v490 = vmax.f32 %v359, 0.0
  %v491 = vmax.f32 %v361, 0.0
  %v492 = vmax.f32 %v364, 0.0
  %v493 = vmax.f32 %v366, 0.0
  %v494 = vmax.f32 %v369, 0.0
  %v495 = vmax.f32 %v371, 0.0
  %v496 = vmax.f32 %v374, 0.0
  %v497 = vmax.f32 %v376, 0.0
  %v498 = vmax.f32 %v379, 0.0
  %v499 = vmax.f32 %v381, 0.0
  %v500 = vmax.f32 %v384, 0.0
  %v501 = vmax.f32 %v386, 0.0
  %v502 = vmax.f32 %v389, 0.0
  %v503 = vmax.f32 %v391, 0.0
  %v504 = vmax.f32 %v394, 0.0
  %v505 = vmax.f32 %v396, 0.0
  %v506 = vmax.f32 %v399, 0.0
  %v507 = vmax.f32 %v401, 0.0
  %v508 = vmax.f32 %v404, 0.0
  %v509 = vmax.f32 %v406, 0.0
  %v510 = vmax.f32 %v409, 0.0
  %v511 = vmax.f32 %v411, 0.0
  %v512 = vmax.f32 %v414, 0.0
  %v513 = vmax.f32 %v416, 0.0
  %v514 = vmax.f32 %v419, 0.0
  %v515 = vmax.f32 %v421, 0.0
  %v516 = vmax.f32 %v424, 0.0
  %v517 = vmax.f32 %v426, 0.0
  %v518 = vmax.f32 %v429, 0.0
  %v519 = vmax.f32 %v431, 0.0
  %v520 = vmax.f32 %v434, 0.0
  %v521 = vmax.f32 %v436, 0.0
  %v522 = vmax.f32 %v439, 0.0
  %v523 = vmax.f32 %v441, 0.0
  %v524 = vmax.f32 %v444, 0.0
  %v525 = vmax.f32 %v446, 0.0
  %v526 = vmax.f32 %v449, 0.0
  %v527 = vmax.f32 %v451, 0.0
  %v528 = vmax.f32 %v454, 0.0
  %v529 = vmax.f32 %v456, 0.0
  %v530 = vmax.f32 %v459, 0.0
  %v531 = vmax.f32 %v461, 0.0
  %v532 = vmax.f32 %v464, 0.0
  %v533 = vmax.f32 %v466, 0.0
  %v534 = vmax.f32 %v469, 0.0
  %v535 = vmax.f32 %v471, 0.0
  %v536 = vmax.f32 %v474, 0.0
  %v537 = vmax.f32 %v476, 0.0
  %v538 = vmax.f32 %v479, 0.0
  %v539 = vpack.c.bf16 %v482, %v482
  %v540 = vpack.c.bf16 %v483, %v483
  %v541 = vpack.c.bf16 %v484, %v484
  %v542 = vpack.c.bf16 %v485, %v485
  %v543 = vpack.c.bf16 %v486, %v486
  %v544 = vpack.c.bf16 %v487, %v487
  %v545 = vpack.c.bf16 %v488, %v488
  %v546 = vpack.c.bf16 %v489, %v489
  %v547 = vpack.c.bf16 %v490, %v490
  %v548 = vpack.c.bf16 %v491, %v491
  %v549 = vpack.c.bf16 %v492, %v492
  %v550 = vpack.c.bf16 %v493, %v493
  %v551 = vpack.c.bf16 %v494, %v494
  %v552 = vpack.c.bf16 %v495, %v495
  %v553 = vpack.c.bf16 %v496, %v496
  %v554 = vpack.c.bf16 %v497, %v497
  %v555 = vpack.c.bf16 %v498, %v498
  %v556 = vpack.c.bf16 %v499, %v499
  %v557 = vpack.c.bf16 %v500, %v500
  %v558 = vpack.c.bf16 %v501, %v501
  %v559 = vpack.c.bf16 %v502, %v502
  %v560 = vpack.c.bf16 %v503, %v503
  %v561 = vpack.c.bf16 %v504, %v504
  %v562 = vpack.c.bf16 %v505, %v505
  %v563 = vpack.c.bf16 %v506, %v506
  %v564 = vpack.c.bf16 %v507, %v507
  %v565 = vpack.c.bf16 %v508, %v508
  %v566 = vpack.c.bf16 %v509, %v509
  %v567 = vpack.c.bf16 %v510, %v510
  %v568 = vpack.c.bf16 %v511, %v511
  %v569 = vpack.c.bf16 %v512, %v512
  %v570 = vpack.c.bf16 %v513, %v513
  %v571 = vpack.c.bf16 %v514, %v514
  %v572 = vpack.c.bf16 %v515, %v515
  %v573 = vpack.c.bf16 %v516, %v516
  %v574 = vpack.c.bf16 %v517, %v517
  %v575 = vpack.c.bf16 %v518, %v518
  %v576 = vpack.c.bf16 %v519, %v519
  %v577 = vpack.c.bf16 %v520, %v520
  %v578 = vpack.c.bf16 %v521, %v521
  %v579 = vpack.c.bf16 %v522, %v522
  %v580 = vpack.c.bf16 %v523, %v523
  %v581 = vpack.c.bf16 %v524, %v524
  %v582 = vpack.c.bf16 %v525, %v525
  %v583 = vpack.c.bf16 %v526, %v526
  %v584 = vpack.c.bf16 %v527, %v527
  %v585 = vpack.c.bf16 %v528, %v528
  %v586 = vpack.c.bf16 %v529, %v529
  %v587 = vpack.c.bf16 %v530, %v530
  %v588 = vpack.c.bf16 %v531, %v531
  %v589 = vpack.c.bf16 %v532, %v532
  %v590 = vpack.c.bf16 %v533, %v533
  %v591 = vpack.c.bf16 %v534, %v534
  %v592 = vpack.c.bf16 %v535, %v535
  %v593 = vpack.c.bf16 %v536, %v536
  %v594 = vpack.c.bf16 %v537, %v537
  %v595 = vpack.c.bf16 %v538, %v538
  %596 = vst [vmem:[%s3] sm:$0xf] %v539
  %597 = vst [vmem:[%s3 + $0x4] sm:$0xf] %v540
  %598 = vst [vmem:[%s3 + $0x8] sm:$0xf] %v541
  %599 = vst [vmem:[%s3 + $0xc] sm:$0xf] %v542
  %600 = vst [vmem:[%s3 + $0x10] sm:$0xf] %v543
  %601 = vst [vmem:[%s3 + $0x14] sm:$0xf] %v544
  %602 = vst [vmem:[%s3 + $0x18] sm:$0xf] %v545
  %603 = vst [vmem:[%s3 + $0x1c] sm:$0xf] %v546
  %604 = vst [vmem:[%s3 + $0x20] sm:$0xf] %v547
  %605 = vst [vmem:[%s3 + $0x24] sm:$0xf] %v548
  %606 = vst [vmem:[%s3 + $0x28] sm:$0xf] %v549
  %607 = vst [vmem:[%s3 + $0x2c] sm:$0xf] %v550
  %608 = vst [vmem:[%s3 + $0x30] sm:$0xf] %v551
  %609 = vst [vmem:[%s3 + $0x34] sm:$0xf] %v552
  %610 = vst [vmem:[%s3 + $0x38] sm:$0xf] %v553
  %611 = vst [vmem:[%s3 + $0x3c] sm:$0xf] %v554
  %612 = vst [vmem:[%s3 + $0x40] sm:$0xf] %v555
  %613 = vst [vmem:[%s3 + $0x44] sm:$0xf] %v556
  %614 = vst [vmem:[%s3 + $0x48] sm:$0xf] %v557
  %615 = vst [vmem:[%s3 + $0x4c] sm:$0xf] %v558
  %616 = vst [vmem:[%s3 + $0x50] sm:$0xf] %v559
  %617 = vst [vmem:[%s3 + $0x54] sm:$0xf] %v560
  %618 = vst [vmem:[%s3 + $0x58] sm:$0xf] %v561
  %619 = vst [vmem:[%s3 + $0x5c] sm:$0xf] %v562
  %620 = vst [vmem:[%s3 + $0x60] sm:$0xf] %v563
  %621 = vst [vmem:[%s3 + $0x64] sm:$0xf] %v564
  %622 = vst [vmem:[%s3 + $0x68] sm:$0xf] %v565
  %623 = vst [vmem:[%s3 + $0x6c] sm:$0xf] %v566
  %624 = vst [vmem:[%s3 + $0x70] sm:$0xf] %v567
  %625 = vst [vmem:[%s3 + $0x74] sm:$0xf] %v568
  %626 = vst [vmem:[%s3 + $0x78] sm:$0xf] %v569
  %627 = vst [vmem:[%s3 + $0x7c] sm:$0xf] %v570
  %628 = vst [vmem:[%s3 + $0x80] sm:$0xf] %v571
  %629 = vst [vmem:[%s3 + $0x84] sm:$0xf] %v572
  %630 = vst [vmem:[%s3 + $0x88] sm:$0xf] %v573
  %631 = vst [vmem:[%s3 + $0x8c] sm:$0xf] %v574
  %632 = vst [vmem:[%s3 + $0x90] sm:$0xf] %v575
  %633 = vst [vmem:[%s3 + $0x94] sm:$0xf] %v576
  %634 = vst [vmem:[%s3 + $0x98] sm:$0xf] %v577
  %635 = vst [vmem:[%s3 + $0x9c] sm:$0xf] %v578
  %636 = vst [vmem:[%s3 + $0xa0] sm:$0xf] %v579
  %637 = vst [vmem:[%s3 + $0xa4] sm:$0xf] %v580
  %638 = vst [vmem:[%s3 + $0xa8] sm:$0xf] %v581
  %639 = vst [vmem:[%s3 + $0xac] sm:$0xf] %v582
  %640 = vst [vmem:[%s3 + $0xb0] sm:$0xf] %v583
  %641 = vst [vmem:[%s3 + $0xb4] sm:$0xf] %v584
  %642 = vst [vmem:[%s3 + $0xb8] sm:$0xf] %v585
  %643 = vst [vmem:[%s3 + $0xbc] sm:$0xf] %v586
  %644 = vst [vmem:[%s3 + $0xc0] sm:$0xf] %v587
  %645 = vst [vmem:[%s3 + $0xc4] sm:$0xf] %v588
  %646 = vst [vmem:[%s3 + $0xc8] sm:$0xf] %v589
  %647 = vst [vmem:[%s3 + $0xcc] sm:$0xf] %v590
  %648 = vst [vmem:[%s3 + $0xd0] sm:$0xf] %v591
  %649 = vst [vmem:[%s3 + $0xd4] sm:$0xf] %v592
  %650 = vst [vmem:[%s3 + $0xd8] sm:$0xf] %v593
  %651 = vst [vmem:[%s3 + $0xdc] sm:$0xf] %v594
  %652 = vst [vmem:[%s3 + $0xe0] sm:$0x1] %v595
  // Predicated region
  $region14: #{conv_image_encoder.5} parent=0 // pred_check
    _
  $region15: #{conv_image_encoder.5} parent=0 // pred_check_branch
    %654 = sbr.rel (0) target = $region17
  $region16: #{conv_image_encoder.5} parent=0 // pred_region
    _
  $region17: #{conv_image_encoder.5} parent=0 // pred_fallthru
    _
  // Predicated region
  $region18: #{conv_image_encoder.5} parent=0 // pred_check
    _
  $region19: #{conv_image_encoder.5} parent=0 // pred_check_branch
    %656 = sbr.rel (0) target = $region21
  $region20: #{conv_image_encoder.5} parent=0 // pred_region
    _
  $region21: #{conv_image_encoder.5} parent=0 // pred_fallthru
    _

// kernel: conv_image_encoder.6
$region0: #{conv_image_encoder.6}
  #allocation0 [shape = 'u32[]', space=smem, size = 0x4, offset = 0x4, fixed_abs, tag = 'smem constant byte address 0x4 - core index']
  #allocation1 [shape = 'u32[72,128]{1,0:T(1,128)}', space=vmem, size = 0x9000, scoped, tag = 'internal scratch']
  %s0 = inlined_call_operand.vmem [shape: bf16[338,288], index: 0, kind: input, shape index: {}]
  %s1 = inlined_call_operand.vmem [shape: bf16[288,128], index: 1, kind: input, shape index: {}]
  %s2 = inlined_call_operand.vmem [shape: f32[1,128], index: 2, kind: input, shape index: {}]
  %s3 = inlined_call_operand.vmem [shape: bf16[338,128], index: 3, kind: output, shape index: {}]
  %s4 = sld [smem:[#allocation0]]
  $region22: #{conv_image_encoder.6} parent=0
    _
  %s6 = ssub.s32 1, %s4
  %s7 = scalar_select 0, %s6, %s4
  // Predicated region
  $region2: #{conv_image_encoder.6} parent=0 // pred_check
    _
  $region3: #{conv_image_encoder.6} parent=0 // pred_check_branch
    %9 = sbr.rel (0) target = $region5
  $region4: #{conv_image_encoder.6} parent=0 // pred_region
    _
  $region5: #{conv_image_encoder.6} parent=0 // pred_fallthru
    _
  // Predicated region
  $region6: #{conv_image_encoder.6} parent=0 // pred_check
    _
  $region7: #{conv_image_encoder.6} parent=0 // pred_check_branch
    %11 = sbr.rel (0) target = $region9
  $region8: #{conv_image_encoder.6} parent=0 // pred_region
    _
  $region9: #{conv_image_encoder.6} parent=0 // pred_fallthru
    _
  // Predicated region
  $region10: #{conv_image_encoder.6} parent=0 // pred_check
    _
  $region11: #{conv_image_encoder.6} parent=0 // pred_check_branch
    %13 = sbr.rel (0) target = $region13
  $region12: #{conv_image_encoder.6} parent=0 // pred_region
    _
  $region13: #{conv_image_encoder.6} parent=0 // pred_fallthru
    _
  %v15 = vld [vmem:[%s0] sm:$0xff]
  %v16 = vld [vmem:[%s0 + $0x8] sm:$0xf]
  %v17 = vld [vmem:[%s0 + $0xc] sm:$0xff]
  %v18 = vld [vmem:[%s0 + $0x14] sm:$0xf]
  %v19 = vld [vmem:[%s0 + $0x18] sm:$0xff]
  %v20 = vld [vmem:[%s0 + $0x20] sm:$0xf]
  %v21 = vld [vmem:[%s0 + $0x24] sm:$0xff]
  %v22 = vld [vmem:[%s0 + $0x2c] sm:$0xf]
  %v23 = vld [vmem:[%s0 + $0x30] sm:$0xff]
  %v24 = vld [vmem:[%s0 + $0x38] sm:$0xf]
  %v25 = vld [vmem:[%s0 + $0x3c] sm:$0xff]
  %v26 = vld [vmem:[%s0 + $0x44] sm:$0xf]
  %v27 = vld [vmem:[%s0 + $0x48] sm:$0xff]
  %v28 = vld [vmem:[%s0 + $0x50] sm:$0xf]
  %v29 = vld [vmem:[%s0 + $0x54] sm:$0xff]
  %v30 = vld [vmem:[%s0 + $0x5c] sm:$0xf]
  %v31 = vld [vmem:[%s0 + $0x60] sm:$0xff]
  %v32 = vld [vmem:[%s0 + $0x68] sm:$0xf]
  %v33 = vld [vmem:[%s0 + $0x6c] sm:$0xff]
  %v34 = vld [vmem:[%s0 + $0x74] sm:$0xf]
  %v35 = vld [vmem:[%s0 + $0x78] sm:$0xff]
  %v36 = vld [vmem:[%s0 + $0x80] sm:$0xf]
  %v37 = vld [vmem:[%s0 + $0x84] sm:$0xff]
  %v38 = vld [vmem:[%s0 + $0x8c] sm:$0xf]
  %v39 = vld [vmem:[%s0 + $0x90] sm:$0xff]
  %v40 = vld [vmem:[%s0 + $0x98] sm:$0xf]
  %v41 = vld [vmem:[%s0 + $0x9c] sm:$0xff]
  %v42 = vld [vmem:[%s0 + $0xa4] sm:$0xf]
  %v43 = vld [vmem:[%s0 + $0xa8] sm:$0xff]
  %v44 = vld [vmem:[%s0 + $0xb0] sm:$0xf]
  %v45 = vld [vmem:[%s0 + $0xb4] sm:$0xff]
  %v46 = vld [vmem:[%s0 + $0xbc] sm:$0xf]
  %v47 = vld [vmem:[%s0 + $0xc0] sm:$0xff]
  %v48 = vld [vmem:[%s0 + $0xc8] sm:$0xf]
  %v49 = vld [vmem:[%s0 + $0xcc] sm:$0xff]
  %v50 = vld [vmem:[%s0 + $0xd4] sm:$0xf]
  %v51 = vld [vmem:[%s0 + $0xd8] sm:$0xff]
  %v52 = vld [vmem:[%s0 + $0xe0] sm:$0xf]
  %v53 = vld [vmem:[%s0 + $0xe4] sm:$0xff]
  %v54 = vld [vmem:[%s0 + $0xec] sm:$0xf]
  %v55 = vld [vmem:[%s0 + $0xf0] sm:$0xff]
  %v56 = vld [vmem:[%s0 + $0xf8] sm:$0xf]
  %v57 = vld [vmem:[%s0 + $0xfc] sm:$0xff]
  %v58 = vld [vmem:[%s0 + $0x104] sm:$0xf]
  %v59 = vld [vmem:[%s0 + $0x108] sm:$0xff]
  %v60 = vld [vmem:[%s0 + $0x110] sm:$0xf]
  %v61 = vld [vmem:[%s0 + $0x114] sm:$0xff]
  %v62 = vld [vmem:[%s0 + $0x11c] sm:$0xf]
  %v63 = vld [vmem:[%s0 + $0x120] sm:$0xff]
  %v64 = vld [vmem:[%s0 + $0x128] sm:$0xf]
  %v65 = vld [vmem:[%s0 + $0x12c] sm:$0xff]
  %v66 = vld [vmem:[%s0 + $0x134] sm:$0xf]
  %v67 = vld [vmem:[%s0 + $0x138] sm:$0xff]
  %v68 = vld [vmem:[%s0 + $0x140] sm:$0xf]
  %v69 = vld [vmem:[%s0 + $0x144] sm:$0xff]
  %v70 = vld [vmem:[%s0 + $0x14c] sm:$0xf]
  %v71 = vld [vmem:[%s0 + $0x150] sm:$0xff]
  %v72 = vld [vmem:[%s0 + $0x158] sm:$0xf]
  %v73 = vld [vmem:[%s0 + $0x15c] sm:$0xff]
  %v74 = vld [vmem:[%s0 + $0x164] sm:$0xf]
  %v75 = vld [vmem:[%s0 + $0x168] sm:$0xff]
  %v76 = vld [vmem:[%s0 + $0x170] sm:$0xf]
  %v77 = vld [vmem:[%s0 + $0x174] sm:$0xff]
  %v78 = vld [vmem:[%s0 + $0x17c] sm:$0xf]
  %v79 = vld [vmem:[%s0 + $0x180] sm:$0xff]
  %v80 = vld [vmem:[%s0 + $0x188] sm:$0xf]
  %v81 = vld [vmem:[%s0 + $0x18c] sm:$0xff]
  %v82 = vld [vmem:[%s0 + $0x194] sm:$0xf]
  %v83 = vld [vmem:[%s0 + $0x198] sm:$0xff]
  %v84 = vld [vmem:[%s0 + $0x1a0] sm:$0xf]
  %v85 = vld [vmem:[%s0 + $0x1a4] sm:$0xff]
  %v86 = vld [vmem:[%s0 + $0x1ac] sm:$0xf]
  %v87 = vld [vmem:[%s0 + $0x1b0] sm:$0xff]
  %v88 = vld [vmem:[%s0 + $0x1b8] sm:$0xf]
  %v89 = vld [vmem:[%s0 + $0x1bc] sm:$0xff]
  %v90 = vld [vmem:[%s0 + $0x1c4] sm:$0xf]
  %v91 = vld [vmem:[%s0 + $0x1c8] sm:$0xff]
  %v92 = vld [vmem:[%s0 + $0x1d0] sm:$0xf]
  %v93 = vld [vmem:[%s0 + $0x1d4] sm:$0xff]
  %v94 = vld [vmem:[%s0 + $0x1dc] sm:$0xf]
  %v95 = vld [vmem:[%s0 + $0x1e0] sm:$0xff]
  %v96 = vld [vmem:[%s0 + $0x1e8] sm:$0xf]
  %v97 = vld [vmem:[%s0 + $0x1ec] sm:$0xff]
  %v98 = vld [vmem:[%s0 + $0x1f4] sm:$0xf]
  %v99 = vld [vmem:[%s0 + $0x1f8] sm:$0x11]
  %v100 = vld [vmem:[%s0 + $0x200] sm:$0x1]
  %v101 = vld [vmem:[%s1] sm:$0xf]
  %v102 = vld [vmem:[%s1 + $0x4] sm:$0xf]
  %v103 = vld [vmem:[%s1 + $0x8] sm:$0xf]
  %v104 = vld [vmem:[%s1 + $0xc] sm:$0xf]
  %v105 = vld [vmem:[%s1 + $0x10] sm:$0xf]
  %v106 = vld [vmem:[%s1 + $0x14] sm:$0xf]
  %v107 = vld [vmem:[%s1 + $0x18] sm:$0xf]
  %v108 = vld [vmem:[%s1 + $0x1c] sm:$0xf]
  %v109 = vld [vmem:[%s1 + $0x20] sm:$0xf]
  %v110 = vld [vmem:[%s1 + $0x24] sm:$0xf]
  %v111 = vld [vmem:[%s1 + $0x28] sm:$0xf]
  %v112 = vld [vmem:[%s1 + $0x2c] sm:$0xf]
  %v113 = vld [vmem:[%s1 + $0x30] sm:$0xf]
  %v114 = vld [vmem:[%s1 + $0x34] sm:$0xf]
  %v115 = vld [vmem:[%s1 + $0x38] sm:$0xf]
  %v116 = vld [vmem:[%s1 + $0x3c] sm:$0xf]
  %v117 = vld [vmem:[%s1 + $0x40] sm:$0xf]
  %v118 = vld [vmem:[%s1 + $0x44] sm:$0xf]
  %v119 = vld [vmem:[%s1 + $0x48] sm:$0xf]
  %v120 = vld [vmem:[%s1 + $0x4c] sm:$0xf]
  %v121 = vld [vmem:[%s1 + $0x50] sm:$0xf]
  %v122 = vld [vmem:[%s1 + $0x54] sm:$0xf]
  %v123 = vld [vmem:[%s1 + $0x58] sm:$0xf]
  %v124 = vld [vmem:[%s1 + $0x5c] sm:$0xf]
  %v125 = vld [vmem:[%s1 + $0x60] sm:$0xf]
  %v126 = vld [vmem:[%s1 + $0x64] sm:$0xf]
  %v127 = vld [vmem:[%s1 + $0x68] sm:$0xf]
  %v128 = vld [vmem:[%s1 + $0x6c] sm:$0xf]
  %v129 = vld [vmem:[%s1 + $0x70] sm:$0xf]
  %v130 = vld [vmem:[%s1 + $0x74] sm:$0xf]
  %v131 = vld [vmem:[%s1 + $0x78] sm:$0xf]
  %v132 = vld [vmem:[%s1 + $0x7c] sm:$0xf]
  %v133 = vld [vmem:[%s1 + $0x80] sm:$0xf]
  %v134 = vld [vmem:[%s1 + $0x84] sm:$0xf]
  %v135 = vld [vmem:[%s1 + $0x88] sm:$0xf]
  %v136 = vld [vmem:[%s1 + $0x8c] sm:$0xf]
  %v137 = vld [vmem:[%s2] sm:$0x1]
  %v139 = vperm.slane %v137, 0
  %v227 = vunpack.c.l.b16 %v15
  %v228 = vunpack.c.h.b16 %v15
  %v229 = vunpack.c.l.b16 %v16
  %v230 = vunpack.c.l.b16 %v17
  %v231 = vunpack.c.h.b16 %v17
  %v232 = vunpack.c.l.b16 %v18
  %v233 = vunpack.c.l.b16 %v19
  %v234 = vunpack.c.h.b16 %v19
  %v235 = vunpack.c.l.b16 %v20
  %v236 = vunpack.c.l.b16 %v21
  %v237 = vunpack.c.h.b16 %v21
  %v238 = vunpack.c.l.b16 %v22
  %v239 = vunpack.c.l.b16 %v23
  %v240 = vunpack.c.h.b16 %v23
  %v241 = vunpack.c.l.b16 %v24
  %v242 = vunpack.c.l.b16 %v25
  %v243 = vunpack.c.h.b16 %v25
  %v244 = vunpack.c.l.b16 %v26
  %v245 = vunpack.c.l.b16 %v27
  %v246 = vunpack.c.h.b16 %v27
  %v247 = vunpack.c.l.b16 %v28
  %v248 = vunpack.c.l.b16 %v29
  %v249 = vunpack.c.h.b16 %v29
  %v250 = vunpack.c.l.b16 %v30
  %v251 = vunpack.c.l.b16 %v31
  %v252 = vunpack.c.h.b16 %v31
  %v253 = vunpack.c.l.b16 %v32
  %v254 = vunpack.c.l.b16 %v33
  %v255 = vunpack.c.h.b16 %v33
  %v256 = vunpack.c.l.b16 %v34
  %v257 = vunpack.c.l.b16 %v35
  %v258 = vunpack.c.h.b16 %v35
  %v259 = vunpack.c.l.b16 %v36
  %v260 = vunpack.c.l.b16 %v37
  %v261 = vunpack.c.h.b16 %v37
  %v262 = vunpack.c.l.b16 %v38
  %v263 = vunpack.c.l.b16 %v39
  %v264 = vunpack.c.h.b16 %v39
  %v265 = vunpack.c.l.b16 %v40
  %v266 = vunpack.c.l.b16 %v41
  %v267 = vunpack.c.h.b16 %v41
  %v268 = vunpack.c.l.b16 %v42
  %v269 = vunpack.c.l.b16 %v43
  %v270 = vunpack.c.h.b16 %v43
  %v271 = vunpack.c.l.b16 %v44
  %v272 = vunpack.c.l.b16 %v45
  %v273 = vunpack.c.h.b16 %v45
  %v274 = vunpack.c.l.b16 %v46
  %v275 = vunpack.c.l.b16 %v47
  %v276 = vunpack.c.h.b16 %v47
  %v277 = vunpack.c.l.b16 %v48
  %v278 = vunpack.c.l.b16 %v49
  %v279 = vunpack.c.h.b16 %v49
  %v280 = vunpack.c.l.b16 %v50
  %v281 = vunpack.c.l.b16 %v51
  %v282 = vunpack.c.h.b16 %v51
  %v283 = vunpack.c.l.b16 %v52
  %v284 = vunpack.c.l.b16 %v53
  %v285 = vunpack.c.h.b16 %v53
  %v286 = vunpack.c.l.b16 %v54
  %v287 = vunpack.c.l.b16 %v55
  %v288 = vunpack.c.h.b16 %v55
  %v289 = vunpack.c.l.b16 %v56
  %v290 = vunpack.c.l.b16 %v57
  %v291 = vunpack.c.h.b16 %v57
  %v292 = vunpack.c.l.b16 %v58
  %v293 = vunpack.c.l.b16 %v59
  %v294 = vunpack.c.h.b16 %v59
  %v295 = vunpack.c.l.b16 %v60
  %v296 = vunpack.c.l.b16 %v61
  %v297 = vunpack.c.h.b16 %v61
  %v298 = vunpack.c.l.b16 %v62
  %v299 = vunpack.c.l.b16 %v63
  %v300 = vunpack.c.h.b16 %v63
  %v301 = vunpack.c.l.b16 %v64
  %v302 = vunpack.c.l.b16 %v65
  %v303 = vunpack.c.h.b16 %v65
  %v304 = vunpack.c.l.b16 %v66
  %v305 = vunpack.c.l.b16 %v67
  %v306 = vunpack.c.h.b16 %v67
  %v307 = vunpack.c.l.b16 %v68
  %v308 = vunpack.c.l.b16 %v69
  %v309 = vunpack.c.h.b16 %v69
  %v310 = vunpack.c.l.b16 %v70
  %v311 = vunpack.c.l.b16 %v71
  %v312 = vunpack.c.h.b16 %v71
  %v313 = vunpack.c.l.b16 %v72
  %v314 = vunpack.c.l.b16 %v73
  %v315 = vunpack.c.h.b16 %v73
  %v316 = vunpack.c.l.b16 %v74
  %v317 = vunpack.c.l.b16 %v75
  %v318 = vunpack.c.h.b16 %v75
  %v319 = vunpack.c.l.b16 %v76
  %v320 = vunpack.c.l.b16 %v77
  %v321 = vunpack.c.h.b16 %v77
  %v322 = vunpack.c.l.b16 %v78
  %v323 = vunpack.c.l.b16 %v79
  %v324 = vunpack.c.h.b16 %v79
  %v325 = vunpack.c.l.b16 %v80
  %v326 = vunpack.c.l.b16 %v81
  %v327 = vunpack.c.h.b16 %v81
  %v328 = vunpack.c.l.b16 %v82
  %v329 = vunpack.c.l.b16 %v83
  %v330 = vunpack.c.h.b16 %v83
  %v331 = vunpack.c.l.b16 %v84
  %v332 = vunpack.c.l.b16 %v85
  %v333 = vunpack.c.h.b16 %v85
  %v334 = vunpack.c.l.b16 %v86
  %v335 = vunpack.c.l.b16 %v87
  %v336 = vunpack.c.h.b16 %v87
  %v337 = vunpack.c.l.b16 %v88
  %v338 = vunpack.c.l.b16 %v89
  %v339 = vunpack.c.h.b16 %v89
  %v340 = vunpack.c.l.b16 %v90
  %v341 = vunpack.c.l.b16 %v91
  %v342 = vunpack.c.h.b16 %v91
  %v343 = vunpack.c.l.b16 %v92
  %v344 = vunpack.c.l.b16 %v93
  %v345 = vunpack.c.h.b16 %v93
  %v346 = vunpack.c.l.b16 %v94
  %v347 = vunpack.c.l.b16 %v95
  %v348 = vunpack.c.h.b16 %v95
  %v349 = vunpack.c.l.b16 %v96
  %v350 = vunpack.c.l.b16 %v97
  %v351 = vunpack.c.h.b16 %v97
  %v352 = vunpack.c.l.b16 %v98
  %v353 = vunpack.c.l.b16 %v99
  %v354 = vunpack.c.h.b16 %v99
  %v355 = vunpack.c.l.b16 %v100
  %v356 = vpack.c.b16 %v230, %v227
  %v357 = vpack.c.b16 %v231, %v228
  %v358 = vpack.c.b16 %v232, %v229
  %v359 = vpack.c.b16 %v236, %v233
  %v360 = vpack.c.b16 %v237, %v234
  %v361 = vpack.c.b16 %v238, %v235
  %v362 = vpack.c.b16 %v242, %v239
  %v363 = vpack.c.b16 %v243, %v240
  %v364 = vpack.c.b16 %v244, %v241
  %v365 = vpack.c.b16 %v248, %v245
  %v366 = vpack.c.b16 %v249, %v246
  %v367 = vpack.c.b16 %v250, %v247
  %v368 = vpack.c.b16 %v254, %v251
  %v369 = vpack.c.b16 %v255, %v252
  %v370 = vpack.c.b16 %v256, %v253
  %v371 = vpack.c.b16 %v260, %v257
  %v372 = vpack.c.b16 %v261, %v258
  %v373 = vpack.c.b16 %v262, %v259
  %v374 = vpack.c.b16 %v266, %v263
  %v375 = vpack.c.b16 %v267, %v264
  %v376 = vpack.c.b16 %v268, %v265
  %v377 = vpack.c.b16 %v272, %v269
  %v378 = vpack.c.b16 %v273, %v270
  %v379 = vpack.c.b16 %v274, %v271
  %v380 = vpack.c.b16 %v278, %v275
  %v381 = vpack.c.b16 %v279, %v276
  %v382 = vpack.c.b16 %v280, %v277
  %v383 = vpack.c.b16 %v284, %v281
  %v384 = vpack.c.b16 %v285, %v282
  %v385 = vpack.c.b16 %v286, %v283
  %v386 = vpack.c.b16 %v290, %v287
  %v387 = vpack.c.b16 %v291, %v288
  %v388 = vpack.c.b16 %v292, %v289
  %v389 = vpack.c.b16 %v296, %v293
  %v390 = vpack.c.b16 %v297, %v294
  %v391 = vpack.c.b16 %v298, %v295
  %v392 = vpack.c.b16 %v302, %v299
  %v393 = vpack.c.b16 %v303, %v300
  %v394 = vpack.c.b16 %v304, %v301
  %v395 = vpack.c.b16 %v308, %v305
  %v396 = vpack.c.b16 %v309, %v306
  %v397 = vpack.c.b16 %v310, %v307
  %v398 = vpack.c.b16 %v314, %v311
  %v399 = vpack.c.b16 %v315, %v312
  %v400 = vpack.c.b16 %v316, %v313
  %v401 = vpack.c.b16 %v320, %v317
  %v402 = vpack.c.b16 %v321, %v318
  %v403 = vpack.c.b16 %v322, %v319
  %v404 = vpack.c.b16 %v326, %v323
  %v405 = vpack.c.b16 %v327, %v324
  %v406 = vpack.c.b16 %v328, %v325
  %v407 = vpack.c.b16 %v332, %v329
  %v408 = vpack.c.b16 %v333, %v330
  %v409 = vpack.c.b16 %v334, %v331
  %v410 = vpack.c.b16 %v338, %v335
  %v411 = vpack.c.b16 %v339, %v336
  %v412 = vpack.c.b16 %v340, %v337
  %v413 = vpack.c.b16 %v344, %v341
  %v414 = vpack.c.b16 %v345, %v342
  %v415 = vpack.c.b16 %v346, %v343
  %v416 = vpack.c.b16 %v350, %v347
  %v417 = vpack.c.b16 %v351, %v348
  %v418 = vpack.c.b16 %v352, %v349
  %v419 = vpack.c.b16 %v353, %v353
  %v420 = vpack.c.b16 %v354, %v354
  %v421 = vpack.c.b16 %v355, %v355
  %v502 = vunpack.c.l.b16 %v101
  %v503 = vunpack.c.l.b16 %v102
  %v504 = vunpack.c.l.b16 %v103
  %v505 = vunpack.c.l.b16 %v104
  %v506 = vunpack.c.l.b16 %v105
  %v507 = vunpack.c.l.b16 %v106
  %v508 = vunpack.c.l.b16 %v107
  %v509 = vunpack.c.l.b16 %v108
  %v510 = vunpack.c.l.b16 %v109
  %v511 = vunpack.c.l.b16 %v110
  %v512 = vunpack.c.l.b16 %v111
  %v513 = vunpack.c.l.b16 %v112
  %v514 = vunpack.c.l.b16 %v113
  %v515 = vunpack.c.l.b16 %v114
  %v516 = vunpack.c.l.b16 %v115
  %v517 = vunpack.c.l.b16 %v116
  %v518 = vunpack.c.l.b16 %v117
  %v519 = vunpack.c.l.b16 %v118
  %v520 = vunpack.c.l.b16 %v119
  %v521 = vunpack.c.l.b16 %v120
  %v522 = vunpack.c.l.b16 %v121
  %v523 = vunpack.c.l.b16 %v122
  %v524 = vunpack.c.l.b16 %v123
  %v525 = vunpack.c.l.b16 %v124
  %v526 = vunpack.c.l.b16 %v125
  %v527 = vunpack.c.l.b16 %v126
  %v528 = vunpack.c.l.b16 %v127
  %v529 = vunpack.c.l.b16 %v128
  %v530 = vunpack.c.l.b16 %v129
  %v531 = vunpack.c.l.b16 %v130
  %v532 = vunpack.c.l.b16 %v131
  %v533 = vunpack.c.l.b16 %v132
  %v534 = vunpack.c.l.b16 %v133
  %v535 = vunpack.c.l.b16 %v134
  %v536 = vunpack.c.l.b16 %v135
  %v537 = vunpack.c.l.b16 %v136
  %v538 = vpack.c.b16 %v503, %v502
  %v539 = vpack.c.b16 %v505, %v504
  %v540 = vpack.c.b16 %v507, %v506
  %v541 = vpack.c.b16 %v509, %v508
  %v542 = vpack.c.b16 %v511, %v510
  %v543 = vpack.c.b16 %v513, %v512
  %v544 = vpack.c.b16 %v515, %v514
  %v545 = vpack.c.b16 %v517, %v516
  %v546 = vpack.c.b16 %v519, %v518
  %v547 = vpack.c.b16 %v521, %v520
  %v548 = vpack.c.b16 %v523, %v522
  %v549 = vpack.c.b16 %v525, %v524
  %v550 = vpack.c.b16 %v527, %v526
  %v551 = vpack.c.b16 %v529, %v528
  %v552 = vpack.c.b16 %v531, %v530
  %v553 = vpack.c.b16 %v533, %v532
  %v554 = vpack.c.b16 %v535, %v534
  %v555 = vpack.c.b16 %v537, %v536
  %vm574 = vcmask 261120
  %v576 = vsel %vm574, %v358, 0
  %v579 = vsel %vm574, %v361, 0
  %v582 = vsel %vm574, %v364, 0
  %v585 = vsel %vm574, %v367, 0
  %v588 = vsel %vm574, %v370, 0
  %v591 = vsel %vm574, %v373, 0
  %v594 = vsel %vm574, %v376, 0
  %v597 = vsel %vm574, %v379, 0
  %v600 = vsel %vm574, %v382, 0
  %v603 = vsel %vm574, %v385, 0
  %v606 = vsel %vm574, %v388, 0
  %v609 = vsel %vm574, %v391, 0
  %v612 = vsel %vm574, %v394, 0
  %v615 = vsel %vm574, %v397, 0
  %v618 = vsel %vm574, %v400, 0
  %v621 = vsel %vm574, %v403, 0
  %v624 = vsel %vm574, %v406, 0
  %v627 = vsel %vm574, %v409, 0
  %v630 = vsel %vm574, %v412, 0
  %v633 = vsel %vm574, %v415, 0
  %v636 = vsel %vm574, %v418, 0
  %v639 = vsel %vm574, %v421, 0
  %641 = vmatpush.bf16.msra.mxu0 %v545
  %642 = vmatpush.bf16.msra.mxu0 %v544
  %643 = vmatpush.bf16.msra.mxu0 %v543
  %644 = vmatpush.bf16.msra.mxu0 %v542
  %645 = vmatpush.bf16.msra.mxu0 %v541
  %646 = vmatpush.bf16.msra.mxu0 %v540
  %647 = vmatpush.bf16.msra.mxu0 %v539
  %648 = vmatpush.bf16.msra.mxu0 %v538
  %649 = vmatmul.bf16.gmra.mxu0 %v356
  %v650 = vpop.f32.mrf.mxu0
  %v651 = vadd.f32 %v139, %v650
  %v652 = vpop.f32.mrf.mxu0
  %v653 = vadd.f32 %v139, %v652
  %654 = vmatmul.bf16.gmra.mxu0 %v359
  %v655 = vpop.f32.mrf.mxu0
  %v656 = vadd.f32 %v139, %v655
  %v657 = vpop.f32.mrf.mxu0
  %v658 = vadd.f32 %v139, %v657
  %659 = vmatmul.bf16.gmra.mxu0 %v362
  %v660 = vpop.f32.mrf.mxu0
  %v661 = vadd.f32 %v139, %v660
  %v662 = vpop.f32.mrf.mxu0
  %v663 = vadd.f32 %v139, %v662
  %664 = vmatmul.bf16.gmra.mxu0 %v365
  %v665 = vpop.f32.mrf.mxu0
  %v666 = vadd.f32 %v139, %v665
  %v667 = vpop.f32.mrf.mxu0
  %v668 = vadd.f32 %v139, %v667
  %669 = vmatmul.bf16.gmra.mxu0 %v368
  %v670 = vpop.f32.mrf.mxu0
  %v671 = vadd.f32 %v139, %v670
  %v672 = vpop.f32.mrf.mxu0
  %v673 = vadd.f32 %v139, %v672
  %674 = vmatmul.bf16.gmra.mxu0 %v371
  %v675 = vpop.f32.mrf.mxu0
  %v676 = vadd.f32 %v139, %v675
  %v677 = vpop.f32.mrf.mxu0
  %v678 = vadd.f32 %v139, %v677
  %679 = vmatmul.bf16.gmra.mxu0 %v374
  %v680 = vpop.f32.mrf.mxu0
  %v681 = vadd.f32 %v139, %v680
  %v682 = vpop.f32.mrf.mxu0
  %v683 = vadd.f32 %v139, %v682
  %684 = vmatmul.bf16.gmra.mxu0 %v377
  %v685 = vpop.f32.mrf.mxu0
  %v686 = vadd.f32 %v139, %v685
  %v687 = vpop.f32.mrf.mxu0
  %v688 = vadd.f32 %v139, %v687
  %689 = vmatmul.bf16.gmra.mxu0 %v380
  %v690 = vpop.f32.mrf.mxu0
  %v691 = vadd.f32 %v139, %v690
  %v692 = vpop.f32.mrf.mxu0
  %v693 = vadd.f32 %v139, %v692
  %694 = vmatmul.bf16.gmra.mxu0 %v383
  %v695 = vpop.f32.mrf.mxu0
  %v696 = vadd.f32 %v139, %v695
  %v697 = vpop.f32.mrf.mxu0
  %v698 = vadd.f32 %v139, %v697
  %699 = vmatmul.bf16.gmra.mxu0 %v386
  %v700 = vpop.f32.mrf.mxu0
  %v701 = vadd.f32 %v139, %v700
  %v702 = vpop.f32.mrf.mxu0
  %v703 = vadd.f32 %v139, %v702
  %704 = vmatmul.bf16.gmra.mxu0 %v389
  %v705 = vpop.f32.mrf.mxu0
  %v706 = vadd.f32 %v139, %v705
  %v707 = vpop.f32.mrf.mxu0
  %v708 = vadd.f32 %v139, %v707
  %709 = vmatmul.bf16.gmra.mxu0 %v392
  %v710 = vpop.f32.mrf.mxu0
  %v711 = vadd.f32 %v139, %v710
  %v712 = vpop.f32.mrf.mxu0
  %v713 = vadd.f32 %v139, %v712
  %714 = vmatmul.bf16.gmra.mxu0 %v395
  %v715 = vpop.f32.mrf.mxu0
  %v716 = vadd.f32 %v139, %v715
  %v717 = vpop.f32.mrf.mxu0
  %v718 = vadd.f32 %v139, %v717
  %719 = vmatmul.bf16.gmra.mxu0 %v398
  %v720 = vpop.f32.mrf.mxu0
  %v721 = vadd.f32 %v139, %v720
  %v722 = vpop.f32.mrf.mxu0
  %v723 = vadd.f32 %v139, %v722
  %724 = vmatmul.bf16.gmra.mxu0 %v401
  %v725 = vpop.f32.mrf.mxu0
  %v726 = vadd.f32 %v139, %v725
  %v727 = vpop.f32.mrf.mxu0
  %v728 = vadd.f32 %v139, %v727
  %729 = vmatmul.bf16.gmra.mxu0 %v404
  %v730 = vpop.f32.mrf.mxu0
  %v731 = vadd.f32 %v139, %v730
  %v732 = vpop.f32.mrf.mxu0
  %v733 = vadd.f32 %v139, %v732
  %734 = vmatmul.bf16.gmra.mxu0 %v407
  %v735 = vpop.f32.mrf.mxu0
  %v736 = vadd.f32 %v139, %v735
  %v737 = vpop.f32.mrf.mxu0
  %v738 = vadd.f32 %v139, %v737
  %739 = vmatmul.bf16.gmra.mxu0 %v410
  %v740 = vpop.f32.mrf.mxu0
  %v741 = vadd.f32 %v139, %v740
  %v742 = vpop.f32.mrf.mxu0
  %v743 = vadd.f32 %v139, %v742
  %744 = vmatmul.bf16.gmra.mxu0 %v413
  %v745 = vpop.f32.mrf.mxu0
  %v746 = vadd.f32 %v139, %v745
  %v747 = vpop.f32.mrf.mxu0
  %v748 = vadd.f32 %v139, %v747
  %749 = vmatmul.bf16.gmra.mxu0 %v416
  %v750 = vpop.f32.mrf.mxu0
  %v751 = vadd.f32 %v139, %v750
  %v752 = vpop.f32.mrf.mxu0
  %v753 = vadd.f32 %v139, %v752
  %754 = vmatmul.bf16.gmra.mxu0 %v419
  %v755 = vpop.f32.mrf.mxu0
  %v756 = vadd.f32 %v139, %v755
  %v757 = vpop.f32.mrf.mxu0
  %758 = vdwg.mxu0
  %759 = vmatpush.bf16.msra.mxu0 %v553
  %760 = vmatpush.bf16.msra.mxu0 %v552
  %761 = vmatpush.bf16.msra.mxu0 %v551
  %762 = vmatpush.bf16.msra.mxu0 %v550
  %763 = vmatpush.bf16.msra.mxu0 %v549
  %764 = vmatpush.bf16.msra.mxu0 %v548
  %765 = vmatpush.bf16.msra.mxu0 %v547
  %766 = vmatpush.bf16.msra.mxu0 %v546
  %767 = vmatmul.bf16.gmra.mxu0 %v357
  %v768 = vpop.f32.mrf.mxu0
  %v769 = vadd.f32 %v651, %v768
  %v770 = vpop.f32.mrf.mxu0
  %v771 = vadd.f32 %v653, %v770
  %772 = vmatmul.bf16.gmra.mxu0 %v360
  %v773 = vpop.f32.mrf.mxu0
  %v774 = vadd.f32 %v656, %v773
  %v775 = vpop.f32.mrf.mxu0
  %v776 = vadd.f32 %v658, %v775
  %777 = vmatmul.bf16.gmra.mxu0 %v363
  %v778 = vpop.f32.mrf.mxu0
  %v779 = vadd.f32 %v661, %v778
  %v780 = vpop.f32.mrf.mxu0
  %v781 = vadd.f32 %v663, %v780
  %782 = vmatmul.bf16.gmra.mxu0 %v366
  %v783 = vpop.f32.mrf.mxu0
  %v784 = vadd.f32 %v666, %v783
  %v785 = vpop.f32.mrf.mxu0
  %v786 = vadd.f32 %v668, %v785
  %787 = vmatmul.bf16.gmra.mxu0 %v369
  %v788 = vpop.f32.mrf.mxu0
  %v789 = vadd.f32 %v671, %v788
  %v790 = vpop.f32.mrf.mxu0
  %v791 = vadd.f32 %v673, %v790
  %792 = vmatmul.bf16.gmra.mxu0 %v372
  %v793 = vpop.f32.mrf.mxu0
  %v794 = vadd.f32 %v676, %v793
  %v795 = vpop.f32.mrf.mxu0
  %v796 = vadd.f32 %v678, %v795
  %797 = vmatmul.bf16.gmra.mxu0 %v375
  %v798 = vpop.f32.mrf.mxu0
  %v799 = vadd.f32 %v681, %v798
  %v800 = vpop.f32.mrf.mxu0
  %v801 = vadd.f32 %v683, %v800
  %802 = vmatmul.bf16.gmra.mxu0 %v378
  %v803 = vpop.f32.mrf.mxu0
  %v804 = vadd.f32 %v686, %v803
  %v805 = vpop.f32.mrf.mxu0
  %v806 = vadd.f32 %v688, %v805
  %807 = vmatmul.bf16.gmra.mxu0 %v381
  %v808 = vpop.f32.mrf.mxu0
  %v809 = vadd.f32 %v691, %v808
  %v810 = vpop.f32.mrf.mxu0
  %v811 = vadd.f32 %v693, %v810
  %812 = vmatmul.bf16.gmra.mxu0 %v384
  %v813 = vpop.f32.mrf.mxu0
  %v814 = vadd.f32 %v696, %v813
  %v815 = vpop.f32.mrf.mxu0
  %v816 = vadd.f32 %v698, %v815
  %817 = vmatmul.bf16.gmra.mxu0 %v387
  %v818 = vpop.f32.mrf.mxu0
  %v819 = vadd.f32 %v701, %v818
  %v820 = vpop.f32.mrf.mxu0
  %v821 = vadd.f32 %v703, %v820
  %822 = vmatmul.bf16.gmra.mxu0 %v390
  %v823 = vpop.f32.mrf.mxu0
  %v824 = vadd.f32 %v706, %v823
  %v825 = vpop.f32.mrf.mxu0
  %v826 = vadd.f32 %v708, %v825
  %827 = vmatmul.bf16.gmra.mxu0 %v393
  %v828 = vpop.f32.mrf.mxu0
  %v829 = vadd.f32 %v711, %v828
  %v830 = vpop.f32.mrf.mxu0
  %v831 = vadd.f32 %v713, %v830
  %832 = vmatmul.bf16.gmra.mxu0 %v396
  %v833 = vpop.f32.mrf.mxu0
  %v834 = vadd.f32 %v716, %v833
  %v835 = vpop.f32.mrf.mxu0
  %v836 = vadd.f32 %v718, %v835
  %837 = vmatmul.bf16.gmra.mxu0 %v399
  %v838 = vpop.f32.mrf.mxu0
  %v839 = vadd.f32 %v721, %v838
  %v840 = vpop.f32.mrf.mxu0
  %v841 = vadd.f32 %v723, %v840
  %842 = vmatmul.bf16.gmra.mxu0 %v402
  %v843 = vpop.f32.mrf.mxu0
  %v844 = vadd.f32 %v726, %v843
  %v845 = vpop.f32.mrf.mxu0
  %v846 = vadd.f32 %v728, %v845
  %847 = vmatmul.bf16.gmra.mxu0 %v405
  %v848 = vpop.f32.mrf.mxu0
  %v849 = vadd.f32 %v731, %v848
  %v850 = vpop.f32.mrf.mxu0
  %v851 = vadd.f32 %v733, %v850
  %852 = vmatmul.bf16.gmra.mxu0 %v408
  %v853 = vpop.f32.mrf.mxu0
  %v854 = vadd.f32 %v736, %v853
  %v855 = vpop.f32.mrf.mxu0
  %v856 = vadd.f32 %v738, %v855
  %857 = vmatmul.bf16.gmra.mxu0 %v411
  %v858 = vpop.f32.mrf.mxu0
  %v859 = vadd.f32 %v741, %v858
  %v860 = vpop.f32.mrf.mxu0
  %v861 = vadd.f32 %v743, %v860
  %862 = vmatmul.bf16.gmra.mxu0 %v414
  %v863 = vpop.f32.mrf.mxu0
  %v864 = vadd.f32 %v746, %v863
  %v865 = vpop.f32.mrf.mxu0
  %v866 = vadd.f32 %v748, %v865
  %867 = vmatmul.bf16.gmra.mxu0 %v417
  %v868 = vpop.f32.mrf.mxu0
  %v869 = vadd.f32 %v751, %v868
  %v870 = vpop.f32.mrf.mxu0
  %v871 = vadd.f32 %v753, %v870
  %872 = vmatmul.bf16.gmra.mxu0 %v420
  %v873 = vpop.f32.mrf.mxu0
  %v874 = vadd.f32 %v756, %v873
  %v875 = vpop.f32.mrf.mxu0
  %876 = vdwg.mxu0
  %877 = vmatpush.bf16.msra.mxu0 0
  %878 = vmatpush.bf16.msra.mxu0 0
  %879 = vmatpush.bf16.msra.mxu0 0
  %880 = vmatpush.bf16.msra.mxu0 0
  %881 = vmatpush.bf16.msra.mxu0 0
  %882 = vmatpush.bf16.msra.mxu0 0
  %883 = vmatpush.bf16.msra.mxu0 %v555
  %884 = vmatpush.bf16.msra.mxu0 %v554
  %885 = vmatmul.bf16.gmra.mxu0 %v576
  %v886 = vpop.f32.mrf.mxu0
  %v887 = vadd.f32 %v769, %v886
  %v888 = vpop.f32.mrf.mxu0
  %v889 = vadd.f32 %v771, %v888
  %890 = vmatmul.bf16.gmra.mxu0 %v579
  %v891 = vpop.f32.mrf.mxu0
  %v892 = vadd.f32 %v774, %v891
  %v893 = vpop.f32.mrf.mxu0
  %v894 = vadd.f32 %v776, %v893
  %895 = vmatmul.bf16.gmra.mxu0 %v582
  %v896 = vpop.f32.mrf.mxu0
  %v897 = vadd.f32 %v779, %v896
  %v898 = vpop.f32.mrf.mxu0
  %v899 = vadd.f32 %v781, %v898
  %900 = vmatmul.bf16.gmra.mxu0 %v585
  %v901 = vpop.f32.mrf.mxu0
  %v902 = vadd.f32 %v784, %v901
  %v903 = vpop.f32.mrf.mxu0
  %v904 = vadd.f32 %v786, %v903
  %905 = vmatmul.bf16.gmra.mxu0 %v588
  %v906 = vpop.f32.mrf.mxu0
  %v907 = vadd.f32 %v789, %v906
  %v908 = vpop.f32.mrf.mxu0
  %v909 = vadd.f32 %v791, %v908
  %910 = vmatmul.bf16.gmra.mxu0 %v591
  %v911 = vpop.f32.mrf.mxu0
  %v912 = vadd.f32 %v794, %v911
  %v913 = vpop.f32.mrf.mxu0
  %v914 = vadd.f32 %v796, %v913
  %915 = vmatmul.bf16.gmra.mxu0 %v594
  %v916 = vpop.f32.mrf.mxu0
  %v917 = vadd.f32 %v799, %v916
  %v918 = vpop.f32.mrf.mxu0
  %v919 = vadd.f32 %v801, %v918
  %920 = vmatmul.bf16.gmra.mxu0 %v597
  %v921 = vpop.f32.mrf.mxu0
  %v922 = vadd.f32 %v804, %v921
  %v923 = vpop.f32.mrf.mxu0
  %v924 = vadd.f32 %v806, %v923
  %925 = vmatmul.bf16.gmra.mxu0 %v600
  %v926 = vpop.f32.mrf.mxu0
  %v927 = vadd.f32 %v809, %v926
  %v928 = vpop.f32.mrf.mxu0
  %v929 = vadd.f32 %v811, %v928
  %930 = vmatmul.bf16.gmra.mxu0 %v603
  %v931 = vpop.f32.mrf.mxu0
  %v932 = vadd.f32 %v814, %v931
  %v933 = vpop.f32.mrf.mxu0
  %v934 = vadd.f32 %v816, %v933
  %935 = vmatmul.bf16.gmra.mxu0 %v606
  %v936 = vpop.f32.mrf.mxu0
  %v937 = vadd.f32 %v819, %v936
  %v938 = vpop.f32.mrf.mxu0
  %v939 = vadd.f32 %v821, %v938
  %940 = vmatmul.bf16.gmra.mxu0 %v609
  %v941 = vpop.f32.mrf.mxu0
  %v942 = vadd.f32 %v824, %v941
  %v943 = vpop.f32.mrf.mxu0
  %v944 = vadd.f32 %v826, %v943
  %945 = vmatmul.bf16.gmra.mxu0 %v612
  %v946 = vpop.f32.mrf.mxu0
  %v947 = vadd.f32 %v829, %v946
  %v948 = vpop.f32.mrf.mxu0
  %v949 = vadd.f32 %v831, %v948
  %950 = vmatmul.bf16.gmra.mxu0 %v615
  %v951 = vpop.f32.mrf.mxu0
  %v952 = vadd.f32 %v834, %v951
  %v953 = vpop.f32.mrf.mxu0
  %v954 = vadd.f32 %v836, %v953
  %955 = vmatmul.bf16.gmra.mxu0 %v618
  %v956 = vpop.f32.mrf.mxu0
  %v957 = vadd.f32 %v839, %v956
  %v958 = vpop.f32.mrf.mxu0
  %v959 = vadd.f32 %v841, %v958
  %960 = vmatmul.bf16.gmra.mxu0 %v621
  %v961 = vpop.f32.mrf.mxu0
  %v962 = vadd.f32 %v844, %v961
  %v963 = vpop.f32.mrf.mxu0
  %v964 = vadd.f32 %v846, %v963
  %965 = vmatmul.bf16.gmra.mxu0 %v624
  %v966 = vpop.f32.mrf.mxu0
  %v967 = vadd.f32 %v849, %v966
  %v968 = vpop.f32.mrf.mxu0
  %v969 = vadd.f32 %v851, %v968
  %970 = vmatmul.bf16.gmra.mxu0 %v627
  %v971 = vpop.f32.mrf.mxu0
  %v972 = vadd.f32 %v854, %v971
  %v973 = vpop.f32.mrf.mxu0
  %v974 = vadd.f32 %v856, %v973
  %975 = vmatmul.bf16.gmra.mxu0 %v630
  %v976 = vpop.f32.mrf.mxu0
  %v977 = vadd.f32 %v859, %v976
  %v978 = vpop.f32.mrf.mxu0
  %v979 = vadd.f32 %v861, %v978
  %980 = vmatmul.bf16.gmra.mxu0 %v633
  %v981 = vpop.f32.mrf.mxu0
  %v982 = vadd.f32 %v864, %v981
  %v983 = vpop.f32.mrf.mxu0
  %v984 = vadd.f32 %v866, %v983
  %985 = vmatmul.bf16.gmra.mxu0 %v636
  %v986 = vpop.f32.mrf.mxu0
  %v987 = vadd.f32 %v869, %v986
  %v988 = vpop.f32.mrf.mxu0
  %v989 = vadd.f32 %v871, %v988
  %990 = vmatmul.bf16.gmra.mxu0 %v639
  %v991 = vpop.f32.mrf.mxu0
  %v992 = vadd.f32 %v874, %v991
  %v993 = vpop.f32.mrf.mxu0
  %994 = vdwg.mxu0
  %v995 = vmax.f32 %v887, 0.0
  %v996 = vmax.f32 %v889, 0.0
  %v997 = vmax.f32 %v892, 0.0
  %v998 = vmax.f32 %v894, 0.0
  %v999 = vmax.f32 %v897, 0.0
  %v1000 = vmax.f32 %v899, 0.0
  %v1001 = vmax.f32 %v902, 0.0
  %v1002 = vmax.f32 %v904, 0.0
  %v1003 = vmax.f32 %v907, 0.0
  %v1004 = vmax.f32 %v909, 0.0
  %v1005 = vmax.f32 %v912, 0.0
  %v1006 = vmax.f32 %v914, 0.0
  %v1007 = vmax.f32 %v917, 0.0
  %v1008 = vmax.f32 %v919, 0.0
  %v1009 = vmax.f32 %v922, 0.0
  %v1010 = vmax.f32 %v924, 0.0
  %v1011 = vmax.f32 %v927, 0.0
  %v1012 = vmax.f32 %v929, 0.0
  %v1013 = vmax.f32 %v932, 0.0
  %v1014 = vmax.f32 %v934, 0.0
  %v1015 = vmax.f32 %v937, 0.0
  %v1016 = vmax.f32 %v939, 0.0
  %v1017 = vmax.f32 %v942, 0.0
  %v1018 = vmax.f32 %v944, 0.0
  %v1019 = vmax.f32 %v947, 0.0
  %v1020 = vmax.f32 %v949, 0.0
  %v1021 = vmax.f32 %v952, 0.0
  %v1022 = vmax.f32 %v954, 0.0
  %v1023 = vmax.f32 %v957, 0.0
  %v1024 = vmax.f32 %v959, 0.0
  %v1025 = vmax.f32 %v962, 0.0
  %v1026 = vmax.f32 %v964, 0.0
  %v1027 = vmax.f32 %v967, 0.0
  %v1028 = vmax.f32 %v969, 0.0
  %v1029 = vmax.f32 %v972, 0.0
  %v1030 = vmax.f32 %v974, 0.0
  %v1031 = vmax.f32 %v977, 0.0
  %v1032 = vmax.f32 %v979, 0.0
  %v1033 = vmax.f32 %v982, 0.0
  %v1034 = vmax.f32 %v984, 0.0
  %v1035 = vmax.f32 %v987, 0.0
  %v1036 = vmax.f32 %v989, 0.0
  %v1037 = vmax.f32 %v992, 0.0
  %v1038 = vpack.c.bf16 %v995, %v995
  %v1039 = vpack.c.bf16 %v996, %v996
  %v1040 = vpack.c.bf16 %v997, %v997
  %v1041 = vpack.c.bf16 %v998, %v998
  %v1042 = vpack.c.bf16 %v999, %v999
  %v1043 = vpack.c.bf16 %v1000, %v1000
  %v1044 = vpack.c.bf16 %v1001, %v1001
  %v1045 = vpack.c.bf16 %v1002, %v1002
  %v1046 = vpack.c.bf16 %v1003, %v1003
  %v1047 = vpack.c.bf16 %v1004, %v1004
  %v1048 = vpack.c.bf16 %v1005, %v1005
  %v1049 = vpack.c.bf16 %v1006, %v1006
  %v1050 = vpack.c.bf16 %v1007, %v1007
  %v1051 = vpack.c.bf16 %v1008, %v1008
  %v1052 = vpack.c.bf16 %v1009, %v1009
  %v1053 = vpack.c.bf16 %v1010, %v1010
  %v1054 = vpack.c.bf16 %v1011, %v1011
  %v1055 = vpack.c.bf16 %v1012, %v1012
  %v1056 = vpack.c.bf16 %v1013, %v1013
  %v1057 = vpack.c.bf16 %v1014, %v1014
  %v1058 = vpack.c.bf16 %v1015, %v1015
  %v1059 = vpack.c.bf16 %v1016, %v1016
  %v1060 = vpack.c.bf16 %v1017, %v1017
  %v1061 = vpack.c.bf16 %v1018, %v1018
  %v1062 = vpack.c.bf16 %v1019, %v1019
  %v1063 = vpack.c.bf16 %v1020, %v1020
  %v1064 = vpack.c.bf16 %v1021, %v1021
  %v1065 = vpack.c.bf16 %v1022, %v1022
  %v1066 = vpack.c.bf16 %v1023, %v1023
  %v1067 = vpack.c.bf16 %v1024, %v1024
  %v1068 = vpack.c.bf16 %v1025, %v1025
  %v1069 = vpack.c.bf16 %v1026, %v1026
  %v1070 = vpack.c.bf16 %v1027, %v1027
  %v1071 = vpack.c.bf16 %v1028, %v1028
  %v1072 = vpack.c.bf16 %v1029, %v1029
  %v1073 = vpack.c.bf16 %v1030, %v1030
  %v1074 = vpack.c.bf16 %v1031, %v1031
  %v1075 = vpack.c.bf16 %v1032, %v1032
  %v1076 = vpack.c.bf16 %v1033, %v1033
  %v1077 = vpack.c.bf16 %v1034, %v1034
  %v1078 = vpack.c.bf16 %v1035, %v1035
  %v1079 = vpack.c.bf16 %v1036, %v1036
  %v1080 = vpack.c.bf16 %v1037, %v1037
  %1081 = vst [vmem:[%s3] sm:$0xf] %v1038
  %1082 = vst [vmem:[%s3 + $0x4] sm:$0xf] %v1039
  %1083 = vst [vmem:[%s3 + $0x8] sm:$0xf] %v1040
  %1084 = vst [vmem:[%s3 + $0xc] sm:$0xf] %v1041
  %1085 = vst [vmem:[%s3 + $0x10] sm:$0xf] %v1042
  %1086 = vst [vmem:[%s3 + $0x14] sm:$0xf] %v1043
  %1087 = vst [vmem:[%s3 + $0x18] sm:$0xf] %v1044
  %1088 = vst [vmem:[%s3 + $0x1c] sm:$0xf] %v1045
  %1089 = vst [vmem:[%s3 + $0x20] sm:$0xf] %v1046
  %1090 = vst [vmem:[%s3 + $0x24] sm:$0xf] %v1047
  %1091 = vst [vmem:[%s3 + $0x28] sm:$0xf] %v1048
  %1092 = vst [vmem:[%s3 + $0x2c] sm:$0xf] %v1049
  %1093 = vst [vmem:[%s3 + $0x30] sm:$0xf] %v1050
  %1094 = vst [vmem:[%s3 + $0x34] sm:$0xf] %v1051
  %1095 = vst [vmem:[%s3 + $0x38] sm:$0xf] %v1052
  %1096 = vst [vmem:[%s3 + $0x3c] sm:$0xf] %v1053
  %1097 = vst [vmem:[%s3 + $0x40] sm:$0xf] %v1054
  %1098 = vst [vmem:[%s3 + $0x44] sm:$0xf] %v1055
  %1099 = vst [vmem:[%s3 + $0x48] sm:$0xf] %v1056
  %1100 = vst [vmem:[%s3 + $0x4c] sm:$0xf] %v1057
  %1101 = vst [vmem:[%s3 + $0x50] sm:$0xf] %v1058
  %1102 = vst [vmem:[%s3 + $0x54] sm:$0xf] %v1059
  %1103 = vst [vmem:[%s3 + $0x58] sm:$0xf] %v1060
  %1104 = vst [vmem:[%s3 + $0x5c] sm:$0xf] %v1061
  %1105 = vst [vmem:[%s3 + $0x60] sm:$0xf] %v1062
  %1106 = vst [vmem:[%s3 + $0x64] sm:$0xf] %v1063
  %1107 = vst [vmem:[%s3 + $0x68] sm:$0xf] %v1064
  %1108 = vst [vmem:[%s3 + $0x6c] sm:$0xf] %v1065
  %1109 = vst [vmem:[%s3 + $0x70] sm:$0xf] %v1066
  %1110 = vst [vmem:[%s3 + $0x74] sm:$0xf] %v1067
  %1111 = vst [vmem:[%s3 + $0x78] sm:$0xf] %v1068
  %1112 = vst [vmem:[%s3 + $0x7c] sm:$0xf] %v1069
  %1113 = vst [vmem:[%s3 + $0x80] sm:$0xf] %v1070
  %1114 = vst [vmem:[%s3 + $0x84] sm:$0xf] %v1071
  %1115 = vst [vmem:[%s3 + $0x88] sm:$0xf] %v1072
  %1116 = vst [vmem:[%s3 + $0x8c] sm:$0xf] %v1073
  %1117 = vst [vmem:[%s3 + $0x90] sm:$0xf] %v1074
  %1118 = vst [vmem:[%s3 + $0x94] sm:$0xf] %v1075
  %1119 = vst [vmem:[%s3 + $0x98] sm:$0xf] %v1076
  %1120 = vst [vmem:[%s3 + $0x9c] sm:$0xf] %v1077
  %1121 = vst [vmem:[%s3 + $0xa0] sm:$0xf] %v1078
  %1122 = vst [vmem:[%s3 + $0xa4] sm:$0xf] %v1079
  %1123 = vst [vmem:[%s3 + $0xa8] sm:$0x1] %v1080
  // Predicated region
  $region14: #{conv_image_encoder.6} parent=0 // pred_check
    _
  $region15: #{conv_image_encoder.6} parent=0 // pred_check_branch
    %1125 = sbr.rel (0) target = $region17
  $region16: #{conv_image_encoder.6} parent=0 // pred_region
    _
  $region17: #{conv_image_encoder.6} parent=0 // pred_fallthru
    _
  // Predicated region
  $region18: #{conv_image_encoder.6} parent=0 // pred_check
    _
  $region19: #{conv_image_encoder.6} parent=0 // pred_check_branch
    %1127 = sbr.rel (0) target = $region21
  $region20: #{conv_image_encoder.6} parent=0 // pred_region
    _
  $region21: #{conv_image_encoder.6} parent=0 // pred_fallthru
    _

// kernel: conv_image_encoder.7
$region0: #{conv_image_encoder.7}
  #allocation0 [shape = 'u32[]', space=smem, size = 0x4, offset = 0x4, fixed_abs, tag = 'smem constant byte address 0x4 - core index']
  #allocation1 [shape = 'u32[72,128]{1,0:T(1,128)}', space=vmem, size = 0x9000, scoped, tag = 'internal scratch']
  %s0 = inlined_call_operand.vmem [shape: bf16[72,288], index: 0, kind: input, shape index: {}]
  %s1 = inlined_call_operand.vmem [shape: bf16[288,128], index: 1, kind: input, shape index: {}]
  %s2 = inlined_call_operand.vmem [shape: f32[1,128], index: 2, kind: input, shape index: {}]
  %s3 = inlined_call_operand.vmem [shape: bf16[72,128], index: 3, kind: output, shape index: {}]
  %s4 = sld [smem:[#allocation0]]
  $region22: #{conv_image_encoder.7} parent=0
    _
  %s6 = ssub.s32 1, %s4
  %s7 = scalar_select 0, %s6, %s4
  // Predicated region
  $region2: #{conv_image_encoder.7} parent=0 // pred_check
    _
  $region3: #{conv_image_encoder.7} parent=0 // pred_check_branch
    %9 = sbr.rel (0) target = $region5
  $region4: #{conv_image_encoder.7} parent=0 // pred_region
    _
  $region5: #{conv_image_encoder.7} parent=0 // pred_fallthru
    _
  // Predicated region
  $region6: #{conv_image_encoder.7} parent=0 // pred_check
    _
  $region7: #{conv_image_encoder.7} parent=0 // pred_check_branch
    %11 = sbr.rel (0) target = $region9
  $region8: #{conv_image_encoder.7} parent=0 // pred_region
    _
  $region9: #{conv_image_encoder.7} parent=0 // pred_fallthru
    _
  // Predicated region
  $region10: #{conv_image_encoder.7} parent=0 // pred_check
    _
  $region11: #{conv_image_encoder.7} parent=0 // pred_check_branch
    %13 = sbr.rel (0) target = $region13
  $region12: #{conv_image_encoder.7} parent=0 // pred_region
    _
  $region13: #{conv_image_encoder.7} parent=0 // pred_fallthru
    _
  %v15 = vld [vmem:[%s0] sm:$0xff]
  %v16 = vld [vmem:[%s0 + $0x8] sm:$0xf]
  %v17 = vld [vmem:[%s0 + $0xc] sm:$0xff]
  %v18 = vld [vmem:[%s0 + $0x14] sm:$0xf]
  %v19 = vld [vmem:[%s0 + $0x18] sm:$0xff]
  %v20 = vld [vmem:[%s0 + $0x20] sm:$0xf]
  %v21 = vld [vmem:[%s0 + $0x24] sm:$0xff]
  %v22 = vld [vmem:[%s0 + $0x2c] sm:$0xf]
  %v23 = vld [vmem:[%s0 + $0x30] sm:$0xff]
  %v24 = vld [vmem:[%s0 + $0x38] sm:$0xf]
  %v25 = vld [vmem:[%s0 + $0x3c] sm:$0xff]
  %v26 = vld [vmem:[%s0 + $0x44] sm:$0xf]
  %v27 = vld [vmem:[%s0 + $0x48] sm:$0xff]
  %v28 = vld [vmem:[%s0 + $0x50] sm:$0xf]
  %v29 = vld [vmem:[%s0 + $0x54] sm:$0xff]
  %v30 = vld [vmem:[%s0 + $0x5c] sm:$0xf]
  %v31 = vld [vmem:[%s0 + $0x60] sm:$0xff]
  %v32 = vld [vmem:[%s0 + $0x68] sm:$0xf]
  %v33 = vld [vmem:[%s1] sm:$0xf]
  %v34 = vld [vmem:[%s1 + $0x4] sm:$0xf]
  %v35 = vld [vmem:[%s1 + $0x8] sm:$0xf]
  %v36 = vld [vmem:[%s1 + $0xc] sm:$0xf]
  %v37 = vld [vmem:[%s1 + $0x10] sm:$0xf]
  %v38 = vld [vmem:[%s1 + $0x14] sm:$0xf]
  %v39 = vld [vmem:[%s1 + $0x18] sm:$0xf]
  %v40 = vld [vmem:[%s1 + $0x1c] sm:$0xf]
  %v41 = vld [vmem:[%s1 + $0x20] sm:$0xf]
  %v42 = vld [vmem:[%s1 + $0x24] sm:$0xf]
  %v43 = vld [vmem:[%s1 + $0x28] sm:$0xf]
  %v44 = vld [vmem:[%s1 + $0x2c] sm:$0xf]
  %v45 = vld [vmem:[%s1 + $0x30] sm:$0xf]
  %v46 = vld [vmem:[%s1 + $0x34] sm:$0xf]
  %v47 = vld [vmem:[%s1 + $0x38] sm:$0xf]
  %v48 = vld [vmem:[%s1 + $0x3c] sm:$0xf]
  %v49 = vld [vmem:[%s1 + $0x40] sm:$0xf]
  %v50 = vld [vmem:[%s1 + $0x44] sm:$0xf]
  %v51 = vld [vmem:[%s1 + $0x48] sm:$0xf]
  %v52 = vld [vmem:[%s1 + $0x4c] sm:$0xf]
  %v53 = vld [vmem:[%s1 + $0x50] sm:$0xf]
  %v54 = vld [vmem:[%s1 + $0x54] sm:$0xf]
  %v55 = vld [vmem:[%s1 + $0x58] sm:$0xf]
  %v56 = vld [vmem:[%s1 + $0x5c] sm:$0xf]
  %v57 = vld [vmem:[%s1 + $0x60] sm:$0xf]
  %v58 = vld [vmem:[%s1 + $0x64] sm:$0xf]
  %v59 = vld [vmem:[%s1 + $0x68] sm:$0xf]
  %v60 = vld [vmem:[%s1 + $0x6c] sm:$0xf]
  %v61 = vld [vmem:[%s1 + $0x70] sm:$0xf]
  %v62 = vld [vmem:[%s1 + $0x74] sm:$0xf]
  %v63 = vld [vmem:[%s1 + $0x78] sm:$0xf]
  %v64 = vld [vmem:[%s1 + $0x7c] sm:$0xf]
  %v65 = vld [vmem:[%s1 + $0x80] sm:$0xf]
  %v66 = vld [vmem:[%s1 + $0x84] sm:$0xf]
  %v67 = vld [vmem:[%s1 + $0x88] sm:$0xf]
  %v68 = vld [vmem:[%s1 + $0x8c] sm:$0xf]
  %v69 = vld [vmem:[%s2] sm:$0x1]
  %v71 = vperm.slane %v69, 0
  %v91 = vunpack.c.l.b16 %v15
  %v92 = vunpack.c.h.b16 %v15
  %v93 = vunpack.c.l.b16 %v16
  %v94 = vunpack.c.l.b16 %v17
  %v95 = vunpack.c.h.b16 %v17
  %v96 = vunpack.c.l.b16 %v18
  %v97 = vunpack.c.l.b16 %v19
  %v98 = vunpack.c.h.b16 %v19
  %v99 = vunpack.c.l.b16 %v20
  %v100 = vunpack.c.l.b16 %v21
  %v101 = vunpack.c.h.b16 %v21
  %v102 = vunpack.c.l.b16 %v22
  %v103 = vunpack.c.l.b16 %v23
  %v104 = vunpack.c.h.b16 %v23
  %v105 = vunpack.c.l.b16 %v24
  %v106 = vunpack.c.l.b16 %v25
  %v107 = vunpack.c.h.b16 %v25
  %v108 = vunpack.c.l.b16 %v26
  %v109 = vunpack.c.l.b16 %v27
  %v110 = vunpack.c.h.b16 %v27
  %v111 = vunpack.c.l.b16 %v28
  %v112 = vunpack.c.l.b16 %v29
  %v113 = vunpack.c.h.b16 %v29
  %v114 = vunpack.c.l.b16 %v30
  %v115 = vunpack.c.l.b16 %v31
  %v116 = vunpack.c.h.b16 %v31
  %v117 = vunpack.c.l.b16 %v32
  %v118 = vpack.c.b16 %v94, %v91
  %v119 = vpack.c.b16 %v95, %v92
  %v120 = vpack.c.b16 %v96, %v93
  %v121 = vpack.c.b16 %v100, %v97
  %v122 = vpack.c.b16 %v101, %v98
  %v123 = vpack.c.b16 %v102, %v99
  %v124 = vpack.c.b16 %v106, %v103
  %v125 = vpack.c.b16 %v107, %v104
  %v126 = vpack.c.b16 %v108, %v105
  %v127 = vpack.c.b16 %v112, %v109
  %v128 = vpack.c.b16 %v113, %v110
  %v129 = vpack.c.b16 %v114, %v111
  %v130 = vpack.c.b16 %v115, %v115
  %v131 = vpack.c.b16 %v116, %v116
  %v132 = vpack.c.b16 %v117, %v117
  %v179 = vunpack.c.l.b16 %v33
  %v180 = vunpack.c.l.b16 %v34
  %v181 = vunpack.c.l.b16 %v35
  %v182 = vunpack.c.l.b16 %v36
  %v183 = vunpack.c.l.b16 %v37
  %v184 = vunpack.c.l.b16 %v38
  %v185 = vunpack.c.l.b16 %v39
  %v186 = vunpack.c.l.b16 %v40
  %v187 = vunpack.c.l.b16 %v41
  %v188 = vunpack.c.l.b16 %v42
  %v189 = vunpack.c.l.b16 %v43
  %v190 = vunpack.c.l.b16 %v44
  %v191 = vunpack.c.l.b16 %v45
  %v192 = vunpack.c.l.b16 %v46
  %v193 = vunpack.c.l.b16 %v47
  %v194 = vunpack.c.l.b16 %v48
  %v195 = vunpack.c.l.b16 %v49
  %v196 = vunpack.c.l.b16 %v50
  %v197 = vunpack.c.l.b16 %v51
  %v198 = vunpack.c.l.b16 %v52
  %v199 = vunpack.c.l.b16 %v53
  %v200 = vunpack.c.l.b16 %v54
  %v201 = vunpack.c.l.b16 %v55
  %v202 = vunpack.c.l.b16 %v56
  %v203 = vunpack.c.l.b16 %v57
  %v204 = vunpack.c.l.b16 %v58
  %v205 = vunpack.c.l.b16 %v59
  %v206 = vunpack.c.l.b16 %v60
  %v207 = vunpack.c.l.b16 %v61
  %v208 = vunpack.c.l.b16 %v62
  %v209 = vunpack.c.l.b16 %v63
  %v210 = vunpack.c.l.b16 %v64
  %v211 = vunpack.c.l.b16 %v65
  %v212 = vunpack.c.l.b16 %v66
  %v213 = vunpack.c.l.b16 %v67
  %v214 = vunpack.c.l.b16 %v68
  %v215 = vpack.c.b16 %v180, %v179
  %v216 = vpack.c.b16 %v182, %v181
  %v217 = vpack.c.b16 %v184, %v183
  %v218 = vpack.c.b16 %v186, %v185
  %v219 = vpack.c.b16 %v188, %v187
  %v220 = vpack.c.b16 %v190, %v189
  %v221 = vpack.c.b16 %v192, %v191
  %v222 = vpack.c.b16 %v194, %v193
  %v223 = vpack.c.b16 %v196, %v195
  %v224 = vpack.c.b16 %v198, %v197
  %v225 = vpack.c.b16 %v200, %v199
  %v226 = vpack.c.b16 %v202, %v201
  %v227 = vpack.c.b16 %v204, %v203
  %v228 = vpack.c.b16 %v206, %v205
  %v229 = vpack.c.b16 %v208, %v207
  %v230 = vpack.c.b16 %v210, %v209
  %v231 = vpack.c.b16 %v212, %v211
  %v232 = vpack.c.b16 %v214, %v213
  %vm251 = vcmask 261120
  %v253 = vsel %vm251, %v120, 0
  %v256 = vsel %vm251, %v123, 0
  %v259 = vsel %vm251, %v126, 0
  %v262 = vsel %vm251, %v129, 0
  %v265 = vsel %vm251, %v132, 0
  %267 = vmatpush.bf16.msra.mxu0 %v222
  %268 = vmatpush.bf16.msra.mxu0 %v221
  %269 = vmatpush.bf16.msra.mxu0 %v220
  %270 = vmatpush.bf16.msra.mxu0 %v219
  %271 = vmatpush.bf16.msra.mxu0 %v218
  %272 = vmatpush.bf16.msra.mxu0 %v217
  %273 = vmatpush.bf16.msra.mxu0 %v216
  %274 = vmatpush.bf16.msra.mxu0 %v215
  %275 = vmatmul.bf16.gmra.mxu0 %v118
  %v276 = vpop.f32.mrf.mxu0
  %v277 = vadd.f32 %v71, %v276
  %v278 = vpop.f32.mrf.mxu0
  %v279 = vadd.f32 %v71, %v278
  %280 = vmatmul.bf16.gmra.mxu0 %v121
  %v281 = vpop.f32.mrf.mxu0
  %v282 = vadd.f32 %v71, %v281
  %v283 = vpop.f32.mrf.mxu0
  %v284 = vadd.f32 %v71, %v283
  %285 = vmatmul.bf16.gmra.mxu0 %v124
  %v286 = vpop.f32.mrf.mxu0
  %v287 = vadd.f32 %v71, %v286
  %v288 = vpop.f32.mrf.mxu0
  %v289 = vadd.f32 %v71, %v288
  %290 = vmatmul.bf16.gmra.mxu0 %v127
  %v291 = vpop.f32.mrf.mxu0
  %v292 = vadd.f32 %v71, %v291
  %v293 = vpop.f32.mrf.mxu0
  %v294 = vadd.f32 %v71, %v293
  %295 = vmatmul.bf16.gmra.mxu0 %v130
  %v296 = vpop.f32.mrf.mxu0
  %v297 = vadd.f32 %v71, %v296
  %v298 = vpop.f32.mrf.mxu0
  %299 = vdwg.mxu0
  %300 = vmatpush.bf16.msra.mxu0 %v230
  %301 = vmatpush.bf16.msra.mxu0 %v229
  %302 = vmatpush.bf16.msra.mxu0 %v228
  %303 = vmatpush.bf16.msra.mxu0 %v227
  %304 = vmatpush.bf16.msra.mxu0 %v226
  %305 = vmatpush.bf16.msra.mxu0 %v225
  %306 = vmatpush.bf16.msra.mxu0 %v224
  %307 = vmatpush.bf16.msra.mxu0 %v223
  %308 = vmatmul.bf16.gmra.mxu0 %v119
  %v309 = vpop.f32.mrf.mxu0
  %v310 = vadd.f32 %v277, %v309
  %v311 = vpop.f32.mrf.mxu0
  %v312 = vadd.f32 %v279, %v311
  %313 = vmatmul.bf16.gmra.mxu0 %v122
  %v314 = vpop.f32.mrf.mxu0
  %v315 = vadd.f32 %v282, %v314
  %v316 = vpop.f32.mrf.mxu0
  %v317 = vadd.f32 %v284, %v316
  %318 = vmatmul.bf16.gmra.mxu0 %v125
  %v319 = vpop.f32.mrf.mxu0
  %v320 = vadd.f32 %v287, %v319
  %v321 = vpop.f32.mrf.mxu0
  %v322 = vadd.f32 %v289, %v321
  %323 = vmatmul.bf16.gmra.mxu0 %v128
  %v324 = vpop.f32.mrf.mxu0
  %v325 = vadd.f32 %v292, %v324
  %v326 = vpop.f32.mrf.mxu0
  %v327 = vadd.f32 %v294, %v326
  %328 = vmatmul.bf16.gmra.mxu0 %v131
  %v329 = vpop.f32.mrf.mxu0
  %v330 = vadd.f32 %v297, %v329
  %v331 = vpop.f32.mrf.mxu0
  %332 = vdwg.mxu0
  %333 = vmatpush.bf16.msra.mxu0 0
  %334 = vmatpush.bf16.msra.mxu0 0
  %335 = vmatpush.bf16.msra.mxu0 0
  %336 = vmatpush.bf16.msra.mxu0 0
  %337 = vmatpush.bf16.msra.mxu0 0
  %338 = vmatpush.bf16.msra.mxu0 0
  %339 = vmatpush.bf16.msra.mxu0 %v232
  %340 = vmatpush.bf16.msra.mxu0 %v231
  %341 = vmatmul.bf16.gmra.mxu0 %v253
  %v342 = vpop.f32.mrf.mxu0
  %v343 = vadd.f32 %v310, %v342
  %v344 = vpop.f32.mrf.mxu0
  %v345 = vadd.f32 %v312, %v344
  %346 = vmatmul.bf16.gmra.mxu0 %v256
  %v347 = vpop.f32.mrf.mxu0
  %v348 = vadd.f32 %v315, %v347
  %v349 = vpop.f32.mrf.mxu0
  %v350 = vadd.f32 %v317, %v349
  %351 = vmatmul.bf16.gmra.mxu0 %v259
  %v352 = vpop.f32.mrf.mxu0
  %v353 = vadd.f32 %v320, %v352
  %v354 = vpop.f32.mrf.mxu0
  %v355 = vadd.f32 %v322, %v354
  %356 = vmatmul.bf16.gmra.mxu0 %v262
  %v357 = vpop.f32.mrf.mxu0
  %v358 = vadd.f32 %v325, %v357
  %v359 = vpop.f32.mrf.mxu0
  %v360 = vadd.f32 %v327, %v359
  %361 = vmatmul.bf16.gmra.mxu0 %v265
  %v362 = vpop.f32.mrf.mxu0
  %v363 = vadd.f32 %v330, %v362
  %v364 = vpop.f32.mrf.mxu0
  %365 = vdwg.mxu0
  %v366 = vmax.f32 %v343, 0.0
  %v367 = vmax.f32 %v345, 0.0
  %v368 = vmax.f32 %v348, 0.0
  %v369 = vmax.f32 %v350, 0.0
  %v370 = vmax.f32 %v353, 0.0
  %v371 = vmax.f32 %v355, 0.0
  %v372 = vmax.f32 %v358, 0.0
  %v373 = vmax.f32 %v360, 0.0
  %v374 = vmax.f32 %v363, 0.0
  %v375 = vpack.c.bf16 %v366, %v366
  %v376 = vpack.c.bf16 %v367, %v367
  %v377 = vpack.c.bf16 %v368, %v368
  %v378 = vpack.c.bf16 %v369, %v369
  %v379 = vpack.c.bf16 %v370, %v370
  %v380 = vpack.c.bf16 %v371, %v371
  %v381 = vpack.c.bf16 %v372, %v372
  %v382 = vpack.c.bf16 %v373, %v373
  %v383 = vpack.c.bf16 %v374, %v374
  %384 = vst [vmem:[%s3] sm:$0xf] %v375
  %385 = vst [vmem:[%s3 + $0x4] sm:$0xf] %v376
  %386 = vst [vmem:[%s3 + $0x8] sm:$0xf] %v377
  %387 = vst [vmem:[%s3 + $0xc] sm:$0xf] %v378
  %388 = vst [vmem:[%s3 + $0x10] sm:$0xf] %v379
  %389 = vst [vmem:[%s3 + $0x14] sm:$0xf] %v380
  %390 = vst [vmem:[%s3 + $0x18] sm:$0xf] %v381
  %391 = vst [vmem:[%s3 + $0x1c] sm:$0xf] %v382
  %392 = vst [vmem:[%s3 + $0x20] sm:$0xf] %v383
  // Predicated region
  $region14: #{conv_image_encoder.7} parent=0 // pred_check
    _
  $region15: #{conv_image_encoder.7} parent=0 // pred_check_branch
    %394 = sbr.rel (0) target = $region17
  $region16: #{conv_image_encoder.7} parent=0 // pred_region
    _
  $region17: #{conv_image_encoder.7} parent=0 // pred_fallthru
    _
  // Predicated region
  $region18: #{conv_image_encoder.7} parent=0 // pred_check
    _
  $region19: #{conv_image_encoder.7} parent=0 // pred_check_branch
    %396 = sbr.rel (0) target = $region21
  $region20: #{conv_image_encoder.7} parent=0 // pred_region
    _
  $region21: #{conv_image_encoder.7} parent=0 // pred_fallthru
    _

// kernel: conv_image_encoder.9
$region0: #{conv_image_encoder.9}
  #allocation0 [shape = 'u32[]', space=smem, size = 0x4, offset = 0x4, fixed_abs, tag = 'smem constant byte address 0x4 - core index']
  #allocation1 [shape = 'u32[72,128]{1,0:T(1,128)}', space=vmem, size = 0x9000, scoped, tag = 'internal scratch']
  %s0 = inlined_call_operand.vmem [shape: bf16[2,128], index: 0, kind: input, shape index: {}]
  %s1 = inlined_call_operand.vmem [shape: bf16[128,64], index: 1, kind: input, shape index: {}]
  %s2 = inlined_call_operand.vmem [shape: f32[1,64], index: 2, kind: input, shape index: {}]
  %s3 = inlined_call_operand.vmem [shape: bf16[64,32], index: 3, kind: input, shape index: {}]
  %s4 = inlined_call_operand.vmem [shape: f32[1,32], index: 4, kind: input, shape index: {}]
  %s5 = inlined_call_operand.hbm [shape: f32[2,32], index: 5, kind: output, shape index: {}]
  %s6 = sld [smem:[#allocation0]]
  $region30: #{conv_image_encoder.9} parent=0
    _
  %s8 = ssub.s32 1, %s6
  %s9 = scalar_select 0, %s8, %s6
  $region1: #{conv_image_encoder.9} parent=0
    #allocation2 [shape = 'u8[1024]{0}', space=vmem, size = 0x400, scoped, tag = 'output window, operand 0, single buffered']
    #allocation3 [shape = 's32[1]{0}', space=sflag, size = 0x4, scoped, tag = 'scoped memory for conv_image_encoder.9']
    %10 = vsyncpa [#allocation3], 0
    // Predicated region
    $region2: #{conv_image_encoder.9} parent=1 // pred_check
      _
    $region3: #{conv_image_encoder.9} parent=1 // pred_check_branch
      %12 = sbr.rel (0) target = $region5
    $region4: #{conv_image_encoder.9} parent=1 // pred_region
      _
    $region5: #{conv_image_encoder.9} parent=1 // pred_fallthru
      _
    // Predicated region
    $region6: #{conv_image_encoder.9} parent=1 // pred_check
      _
    $region7: #{conv_image_encoder.9} parent=1 // pred_check_branch
      %14 = sbr.rel (0) target = $region9
    $region8: #{conv_image_encoder.9} parent=1 // pred_region
      _
    $region9: #{conv_image_encoder.9} parent=1 // pred_fallthru
      _
    // Predicated region
    $region10: #{conv_image_encoder.9} parent=1 // pred_check
      _
    $region11: #{conv_image_encoder.9} parent=1 // pred_check_branch
      %16 = sbr.rel (0) target = $region13
    $region12: #{conv_image_encoder.9} parent=1 // pred_region
      _
    $region13: #{conv_image_encoder.9} parent=1 // pred_fallthru
      _
    // Predicated region
    $region14: #{conv_image_encoder.9} parent=1 // pred_check
      _
    $region15: #{conv_image_encoder.9} parent=1 // pred_check_branch
      %18 = sbr.rel (0) target = $region17
    $region16: #{conv_image_encoder.9} parent=1 // pred_region
      _
    $region17: #{conv_image_encoder.9} parent=1 // pred_fallthru
      _
    // Predicated region
    $region18: #{conv_image_encoder.9} parent=1 // pred_check
      _
    $region19: #{conv_image_encoder.9} parent=1 // pred_check_branch
      %20 = sbr.rel (0) target = $region21
    $region20: #{conv_image_encoder.9} parent=1 // pred_region
      _
    $region21: #{conv_image_encoder.9} parent=1 // pred_fallthru
      _
    %v22 = vld [vmem:[%s0] sm:$0x1]
    %v23 = vld [vmem:[%s1] sm:$0xf]
    %v24 = vld [vmem:[%s1 + $0x4] sm:$0xf]
    %v25 = vld [vmem:[%s1 + $0x8] sm:$0xf]
    %v26 = vld [vmem:[%s1 + $0xc] sm:$0xf]
    %v27 = vld [vmem:[%s1 + $0x10] sm:$0xf]
    %v28 = vld [vmem:[%s1 + $0x14] sm:$0xf]
    %v29 = vld [vmem:[%s1 + $0x18] sm:$0xf]
    %v30 = vld [vmem:[%s1 + $0x1c] sm:$0xf]
    %v31 = vld [vmem:[%s1 + $0x20] sm:$0xf]
    %v32 = vld [vmem:[%s1 + $0x24] sm:$0xf]
    %v33 = vld [vmem:[%s1 + $0x28] sm:$0xf]
    %v34 = vld [vmem:[%s1 + $0x2c] sm:$0xf]
    %v35 = vld [vmem:[%s1 + $0x30] sm:$0xf]
    %v36 = vld [vmem:[%s1 + $0x34] sm:$0xf]
    %v37 = vld [vmem:[%s1 + $0x38] sm:$0xf]
    %v38 = vld [vmem:[%s1 + $0x3c] sm:$0xf]
    %v39 = vld [vmem:[%s2] sm:$0x1]
    %v41 = vperm.slane %v39, 0
    %v59 = vunpack.c.l.b16 %v23
    %v60 = vunpack.c.l.b16 %v24
    %v61 = vunpack.c.l.b16 %v25
    %v62 = vunpack.c.l.b16 %v26
    %v63 = vunpack.c.l.b16 %v27
    %v64 = vunpack.c.l.b16 %v28
    %v65 = vunpack.c.l.b16 %v29
    %v66 = vunpack.c.l.b16 %v30
    %v67 = vunpack.c.l.b16 %v31
    %v68 = vunpack.c.l.b16 %v32
    %v69 = vunpack.c.l.b16 %v33
    %v70 = vunpack.c.l.b16 %v34
    %v71 = vunpack.c.l.b16 %v35
    %v72 = vunpack.c.l.b16 %v36
    %v73 = vunpack.c.l.b16 %v37
    %v74 = vunpack.c.l.b16 %v38
    %v75 = vpack.c.b16 %v60, %v59
    %v76 = vpack.c.b16 %v62, %v61
    %v77 = vpack.c.b16 %v64, %v63
    %v78 = vpack.c.b16 %v66, %v65
    %v79 = vpack.c.b16 %v68, %v67
    %v80 = vpack.c.b16 %v70, %v69
    %v81 = vpack.c.b16 %v72, %v71
    %v82 = vpack.c.b16 %v74, %v73
    %91 = vmatpush.bf16.msra.mxu0 %v82
    %92 = vmatpush.bf16.msra.mxu0 %v81
    %93 = vmatpush.bf16.msra.mxu0 %v80
    %94 = vmatpush.bf16.msra.mxu0 %v79
    %95 = vmatpush.bf16.msra.mxu0 %v78
    %96 = vmatpush.bf16.msra.mxu0 %v77
    %97 = vmatpush.bf16.msra.mxu0 %v76
    %98 = vmatpush.bf16.msra.mxu0 %v75
    %99 = vmatmul.bf16.gmra.mxu0 %v22
    %v100 = vpop.f32.mrf.mxu0
    %v101 = vadd.f32 %v41, %v100
    %v102 = vpop.f32.mrf.mxu0
    %103 = vdwg.mxu0
    %v104 = vmax.f32 %v101, 0.0
    %v105 = vpack.c.bf16 %v104, %v104
    %v106 = vld [vmem:[%s3] sm:$0xf]
    %v107 = vld [vmem:[%s3 + $0x4] sm:$0xf]
    %v108 = vld [vmem:[%s3 + $0x8] sm:$0xf]
    %v109 = vld [vmem:[%s3 + $0xc] sm:$0xf]
    %v110 = vld [vmem:[%s3 + $0x10] sm:$0xf]
    %v111 = vld [vmem:[%s3 + $0x14] sm:$0xf]
    %v112 = vld [vmem:[%s3 + $0x18] sm:$0xf]
    %v113 = vld [vmem:[%s3 + $0x1c] sm:$0xf]
    %v114 = vld [vmem:[%s4] sm:$0x1]
    %v116 = vperm.slane %v114, 0
    %v126 = vunpack.c.l.b16 %v106
    %v127 = vunpack.c.l.b16 %v107
    %v128 = vunpack.c.l.b16 %v108
    %v129 = vunpack.c.l.b16 %v109
    %v130 = vunpack.c.l.b16 %v110
    %v131 = vunpack.c.l.b16 %v111
    %v132 = vunpack.c.l.b16 %v112
    %v133 = vunpack.c.l.b16 %v113
    %v134 = vpack.c.b16 %v127, %v126
    %v135 = vpack.c.b16 %v129, %v128
    %v136 = vpack.c.b16 %v131, %v130
    %v137 = vpack.c.b16 %v133, %v132
    %vm142 = vcmask 523264
    %v144 = vsel %vm142, %v105, 0
    %146 = vmatpush.bf16.msra.mxu0 0
    %147 = vmatpush.bf16.msra.mxu0 0
    %148 = vmatpush.bf16.msra.mxu0 0
    %149 = vmatpush.bf16.msra.mxu0 0
    %150 = vmatpush.bf16.msra.mxu0 %v137
    %151 = vmatpush.bf16.msra.mxu0 %v136
    %152 = vmatpush.bf16.msra.mxu0 %v135
    %153 = vmatpush.bf16.msra.mxu0 %v134
    %154 = vmatmul.bf16.gmra.mxu0 %v144
    %v155 = vpop.f32.mrf.mxu0
    %v156 = vadd.f32 %v116, %v155
    %v157 = vpop.f32.mrf.mxu0
    %158 = vdwg.mxu0
    %vm159 = vcmask 254976
    %160 = vst.msk [vmem:[#allocation2] sm:$0x3] %vm159, %v156
    // Predicated region
    $region22: #{conv_image_encoder.9} parent=1 // pred_check
      _
    $region23: #{conv_image_encoder.9} parent=1 // pred_check_branch
      %162 = sbr.rel (0) target = $region25
    $region24: #{conv_image_encoder.9} parent=1 // pred_region
      %164 = vsyncadd [#allocation3], 0
      %s166 = sshll.u32 [#allocation2], 4
      %s167 = int_to_ptr.vmem [resolvable:$true] %s166
      %s168 = sshll.u32 %s5, 4
      %s169 = int_to_ptr.hbm [resolvable:$true] %s168
      %171 = dma.vmem_to_hbm [thread:$0]  %s167, 32, %s169, [#allocation3]
    $region25: #{conv_image_encoder.9} parent=1 // pred_fallthru
      _
    // Predicated region
    $region26: #{conv_image_encoder.9} parent=1 // pred_check
      _
    $region27: #{conv_image_encoder.9} parent=1 // pred_check_branch
      %173 = sbr.rel (0) target = $region29
    $region28: #{conv_image_encoder.9} parent=1 // pred_region
      %175 = dma.done [#allocation3], 32
    $region29: #{conv_image_encoder.9} parent=1 // pred_fallthru
      _
    %176 = vsyncpa [#allocation3], 1

// kernel: conv_image_encoder.8
$region0: #{conv_image_encoder.8}
  #allocation0 [shape = 'u32[]', space=smem, size = 0x4, offset = 0x4, fixed_abs, tag = 'smem constant byte address 0x4 - core index']
  #allocation1 [shape = 'u32[72,128]{1,0:T(1,128)}', space=vmem, size = 0x9000, scoped, tag = 'internal scratch']
  %s0 = inlined_call_operand.vmem [shape: bf16[8,288], index: 0, kind: input, shape index: {}]
  %s1 = inlined_call_operand.vmem [shape: bf16[288,128], index: 1, kind: input, shape index: {}]
  %s2 = inlined_call_operand.vmem [shape: f32[1,128], index: 2, kind: input, shape index: {}]
  %s3 = inlined_call_operand.vmem [shape: bf16[8,128], index: 3, kind: output, shape index: {}]
  %s4 = sld [smem:[#allocation0]]
  $region22: #{conv_image_encoder.8} parent=0
    _
  %s6 = ssub.s32 1, %s4
  %s7 = scalar_select 0, %s6, %s4
  // Predicated region
  $region2: #{conv_image_encoder.8} parent=0 // pred_check
    _
  $region3: #{conv_image_encoder.8} parent=0 // pred_check_branch
    %9 = sbr.rel (0) target = $region5
  $region4: #{conv_image_encoder.8} parent=0 // pred_region
    _
  $region5: #{conv_image_encoder.8} parent=0 // pred_fallthru
    _
  // Predicated region
  $region6: #{conv_image_encoder.8} parent=0 // pred_check
    _
  $region7: #{conv_image_encoder.8} parent=0 // pred_check_branch
    %11 = sbr.rel (0) target = $region9
  $region8: #{conv_image_encoder.8} parent=0 // pred_region
    _
  $region9: #{conv_image_encoder.8} parent=0 // pred_fallthru
    _
  // Predicated region
  $region10: #{conv_image_encoder.8} parent=0 // pred_check
    _
  $region11: #{conv_image_encoder.8} parent=0 // pred_check_branch
    %13 = sbr.rel (0) target = $region13
  $region12: #{conv_image_encoder.8} parent=0 // pred_region
    _
  $region13: #{conv_image_encoder.8} parent=0 // pred_fallthru
    _
  %v15 = vld [vmem:[%s0] sm:$0xff]
  %v16 = vld [vmem:[%s0 + $0x8] sm:$0xf]
  %v17 = vld [vmem:[%s1] sm:$0xf]
  %v18 = vld [vmem:[%s1 + $0x4] sm:$0xf]
  %v19 = vld [vmem:[%s1 + $0x8] sm:$0xf]
  %v20 = vld [vmem:[%s1 + $0xc] sm:$0xf]
  %v21 = vld [vmem:[%s1 + $0x10] sm:$0xf]
  %v22 = vld [vmem:[%s1 + $0x14] sm:$0xf]
  %v23 = vld [vmem:[%s1 + $0x18] sm:$0xf]
  %v24 = vld [vmem:[%s1 + $0x1c] sm:$0xf]
  %v25 = vld [vmem:[%s1 + $0x20] sm:$0xf]
  %v26 = vld [vmem:[%s1 + $0x24] sm:$0xf]
  %v27 = vld [vmem:[%s1 + $0x28] sm:$0xf]
  %v28 = vld [vmem:[%s1 + $0x2c] sm:$0xf]
  %v29 = vld [vmem:[%s1 + $0x30] sm:$0xf]
  %v30 = vld [vmem:[%s1 + $0x34] sm:$0xf]
  %v31 = vld [vmem:[%s1 + $0x38] sm:$0xf]
  %v32 = vld [vmem:[%s1 + $0x3c] sm:$0xf]
  %v33 = vld [vmem:[%s1 + $0x40] sm:$0xf]
  %v34 = vld [vmem:[%s1 + $0x44] sm:$0xf]
  %v35 = vld [vmem:[%s1 + $0x48] sm:$0xf]
  %v36 = vld [vmem:[%s1 + $0x4c] sm:$0xf]
  %v37 = vld [vmem:[%s1 + $0x50] sm:$0xf]
  %v38 = vld [vmem:[%s1 + $0x54] sm:$0xf]
  %v39 = vld [vmem:[%s1 + $0x58] sm:$0xf]
  %v40 = vld [vmem:[%s1 + $0x5c] sm:$0xf]
  %v41 = vld [vmem:[%s1 + $0x60] sm:$0xf]
  %v42 = vld [vmem:[%s1 + $0x64] sm:$0xf]
  %v43 = vld [vmem:[%s1 + $0x68] sm:$0xf]
  %v44 = vld [vmem:[%s1 + $0x6c] sm:$0xf]
  %v45 = vld [vmem:[%s1 + $0x70] sm:$0xf]
  %v46 = vld [vmem:[%s1 + $0x74] sm:$0xf]
  %v47 = vld [vmem:[%s1 + $0x78] sm:$0xf]
  %v48 = vld [vmem:[%s1 + $0x7c] sm:$0xf]
  %v49 = vld [vmem:[%s1 + $0x80] sm:$0xf]
  %v50 = vld [vmem:[%s1 + $0x84] sm:$0xf]
  %v51 = vld [vmem:[%s1 + $0x88] sm:$0xf]
  %v52 = vld [vmem:[%s1 + $0x8c] sm:$0xf]
  %v53 = vld [vmem:[%s2] sm:$0x1]
  %v55 = vperm.slane %v53, 0
  %v59 = vunpack.c.l.b16 %v15
  %v60 = vunpack.c.h.b16 %v15
  %v61 = vunpack.c.l.b16 %v16
  %v62 = vpack.c.b16 %v59, %v59
  %v63 = vpack.c.b16 %v60, %v60
  %v64 = vpack.c.b16 %v61, %v61
  %v103 = vunpack.c.l.b16 %v17
  %v104 = vunpack.c.l.b16 %v18
  %v105 = vunpack.c.l.b16 %v19
  %v106 = vunpack.c.l.b16 %v20
  %v107 = vunpack.c.l.b16 %v21
  %v108 = vunpack.c.l.b16 %v22
  %v109 = vunpack.c.l.b16 %v23
  %v110 = vunpack.c.l.b16 %v24
  %v111 = vunpack.c.l.b16 %v25
  %v112 = vunpack.c.l.b16 %v26
  %v113 = vunpack.c.l.b16 %v27
  %v114 = vunpack.c.l.b16 %v28
  %v115 = vunpack.c.l.b16 %v29
  %v116 = vunpack.c.l.b16 %v30
  %v117 = vunpack.c.l.b16 %v31
  %v118 = vunpack.c.l.b16 %v32
  %v119 = vunpack.c.l.b16 %v33
  %v120 = vunpack.c.l.b16 %v34
  %v121 = vunpack.c.l.b16 %v35
  %v122 = vunpack.c.l.b16 %v36
  %v123 = vunpack.c.l.b16 %v37
  %v124 = vunpack.c.l.b16 %v38
  %v125 = vunpack.c.l.b16 %v39
  %v126 = vunpack.c.l.b16 %v40
  %v127 = vunpack.c.l.b16 %v41
  %v128 = vunpack.c.l.b16 %v42
  %v129 = vunpack.c.l.b16 %v43
  %v130 = vunpack.c.l.b16 %v44
  %v131 = vunpack.c.l.b16 %v45
  %v132 = vunpack.c.l.b16 %v46
  %v133 = vunpack.c.l.b16 %v47
  %v134 = vunpack.c.l.b16 %v48
  %v135 = vunpack.c.l.b16 %v49
  %v136 = vunpack.c.l.b16 %v50
  %v137 = vunpack.c.l.b16 %v51
  %v138 = vunpack.c.l.b16 %v52
  %v139 = vpack.c.b16 %v104, %v103
  %v140 = vpack.c.b16 %v106, %v105
  %v141 = vpack.c.b16 %v108, %v107
  %v142 = vpack.c.b16 %v110, %v109
  %v143 = vpack.c.b16 %v112, %v111
  %v144 = vpack.c.b16 %v114, %v113
  %v145 = vpack.c.b16 %v116, %v115
  %v146 = vpack.c.b16 %v118, %v117
  %v147 = vpack.c.b16 %v120, %v119
  %v148 = vpack.c.b16 %v122, %v121
  %v149 = vpack.c.b16 %v124, %v123
  %v150 = vpack.c.b16 %v126, %v125
  %v151 = vpack.c.b16 %v128, %v127
  %v152 = vpack.c.b16 %v130, %v129
  %v153 = vpack.c.b16 %v132, %v131
  %v154 = vpack.c.b16 %v134, %v133
  %v155 = vpack.c.b16 %v136, %v135
  %v156 = vpack.c.b16 %v138, %v137
  %vm175 = vcmask 261120
  %v177 = vsel %vm175, %v64, 0
  %179 = vmatpush.bf16.msra.mxu0 %v146
  %180 = vmatpush.bf16.msra.mxu0 %v145
  %181 = vmatpush.bf16.msra.mxu0 %v144
  %182 = vmatpush.bf16.msra.mxu0 %v143
  %183 = vmatpush.bf16.msra.mxu0 %v142
  %184 = vmatpush.bf16.msra.mxu0 %v141
  %185 = vmatpush.bf16.msra.mxu0 %v140
  %186 = vmatpush.bf16.msra.mxu0 %v139
  %187 = vmatmul.bf16.gmra.mxu0 %v62
  %v188 = vpop.f32.mrf.mxu0
  %v189 = vadd.f32 %v55, %v188
  %v190 = vpop.f32.mrf.mxu0
  %191 = vdwg.mxu0
  %192 = vmatpush.bf16.msra.mxu0 %v154
  %193 = vmatpush.bf16.msra.mxu0 %v153
  %194 = vmatpush.bf16.msra.mxu0 %v152
  %195 = vmatpush.bf16.msra.mxu0 %v151
  %196 = vmatpush.bf16.msra.mxu0 %v150
  %197 = vmatpush.bf16.msra.mxu0 %v149
  %198 = vmatpush.bf16.msra.mxu0 %v148
  %199 = vmatpush.bf16.msra.mxu0 %v147
  %200 = vmatmul.bf16.gmra.mxu0 %v63
  %v201 = vpop.f32.mrf.mxu0
  %v202 = vadd.f32 %v189, %v201
  %v203 = vpop.f32.mrf.mxu0
  %204 = vdwg.mxu0
  %205 = vmatpush.bf16.msra.mxu0 0
  %206 = vmatpush.bf16.msra.mxu0 0
  %207 = vmatpush.bf16.msra.mxu0 0
  %208 = vmatpush.bf16.msra.mxu0 0
  %209 = vmatpush.bf16.msra.mxu0 0
  %210 = vmatpush.bf16.msra.mxu0 0
  %211 = vmatpush.bf16.msra.mxu0 %v156
  %212 = vmatpush.bf16.msra.mxu0 %v155
  %213 = vmatmul.bf16.gmra.mxu0 %v177
  %v214 = vpop.f32.mrf.mxu0
  %v215 = vadd.f32 %v202, %v214
  %v216 = vpop.f32.mrf.mxu0
  %217 = vdwg.mxu0
  %v218 = vmax.f32 %v215, 0.0
  %v219 = vpack.c.bf16 %v218, %v218
  %220 = vst [vmem:[%s3] sm:$0xf] %v219
  // Predicated region
  $region14: #{conv_image_encoder.8} parent=0 // pred_check
    _
  $region15: #{conv_image_encoder.8} parent=0 // pred_check_branch
    %222 = sbr.rel (0) target = $region17
  $region16: #{conv_image_encoder.8} parent=0 // pred_region
    _
  $region17: #{conv_image_encoder.8} parent=0 // pred_fallthru
    _
  // Predicated region
  $region18: #{conv_image_encoder.8} parent=0 // pred_check
    _
  $region19: #{conv_image_encoder.8} parent=0 // pred_check_branch
    %224 = sbr.rel (0) target = $region21
  $region20: #{conv_image_encoder.8} parent=0 // pred_region
    _
  $region21: #{conv_image_encoder.8} parent=0 // pred_fallthru
    _

</llo_original>
